<compile_context>
chip_gen: v6e
topology: v6e:2x2x1
jax: 0.10.0
libtpu: 0.0.40
codegen_flags: <defaults>
</compile_context>

<pallas_src>
import functools

import jax
import jax.numpy as jnp
from jax import lax
from jax.experimental import pallas as pl
from jax.experimental.pallas import tpu as pltpu


# ----------------------------------------------------------------------------
# Kernel A: passport scale/bias path, fully fused (runs once, tiny).
#   col 0: bias = decode(leaky_relu(encode(mean_{b,h,w} conv(key))))
#   col 1: scale = decode(leaky_relu(encode(mean_{b,h,w} conv(skey))))
# ----------------------------------------------------------------------------
def _passport_kernel(keys_ref, w_ref, wenc_ref, wdec_ref, sb_ref, pm_ref,
                     *, H, W, Cin):
    # keys_ref: (Cin, 2, H, W)   batch-averaged [key | skey] stacked on axis 1
    # w_ref   : (Cout, 9*Cin)    im2col conv weight, column order (kh, kw, cin)
    # wenc_ref: (Cout//4, Cout)  encode weight (PyTorch layout, used as-is)
    # wdec_ref: (Cout, Cout//4)  decode weight (PyTorch layout, used as-is)
    # sb_ref  : (Cout, 2)        col 0 = bias (key), col 1 = scale (skey)
    # pm_ref  : (9*Cin, 2)       scratch: K-major per-tap window means
    inv_hw = 1.0 / float(H * W)
    for kh in range(3):
        for kw in range(3):
            dh, dw = kh - 1, kw - 1
            t = kh * 3 + kw
            # mean_{h,w} key_pad[c, h+kh, w+kw] == mean over a sub-rectangle of
            # the UNpadded key (the zero pad contributes nothing) -> no pad.
            r0, r1 = max(0, dh), H + min(0, dh)
            c0, c1 = max(0, dw), W + min(0, dw)
            win = keys_ref[:, :, r0:r1, c0:c1]              # (Cin, 2, h, w)
            pm_ref[t * Cin:(t + 1) * Cin, :] = (
                win.sum(axis=3).sum(axis=2) * inv_hw)       # (Cin, 2)
    m = jnp.dot(w_ref[...], pm_ref[...],
                preferred_element_type=jnp.float32)         # (Cout, 2)
    e = jnp.dot(wenc_ref[...], m,
                preferred_element_type=jnp.float32)         # (Cout//4, 2)
    e = jnp.where(e > 0, e, 0.01 * e)                       # LeakyReLU(0.01)
    sb_ref[...] = jnp.dot(wdec_ref[...], e,
                          preferred_element_type=jnp.float32)  # (Cout, 2)


def passport_scale_bias(keys, w_im2col, w_enc, w_dec):
    # keys: (Cin, 2, H, W); w_im2col: (Cout, 9*Cin)
    # w_enc: (Cout//4, Cout), w_dec: (Cout, Cout//4)  [PyTorch Linear layout]
    cin, _, H, W = keys.shape
    cout = w_im2col.shape[0]
    cmid = w_enc.shape[0]
    kernel = functools.partial(_passport_kernel, H=H, W=W, Cin=cin)
    return pl.pallas_call(
        kernel,
        out_shape=jax.ShapeDtypeStruct((cout, 2), jnp.float32),
        grid=(1,),
        in_specs=[
            pl.BlockSpec((cin, 2, H, W), lambda i: (0, 0, 0, 0)),
            pl.BlockSpec((cout, 9 * cin), lambda i: (0, 0)),
            pl.BlockSpec((cmid, cout), lambda i: (0, 0)),
            pl.BlockSpec((cout, cmid), lambda i: (0, 0)),
        ],
        out_specs=pl.BlockSpec((cout, 2), lambda i: (0, 0)),
        scratch_shapes=[pltpu.VMEM((9 * cin, 2), jnp.float32)],
    )(keys, w_im2col, w_enc, w_dec)


# ----------------------------------------------------------------------------
# Kernel B: y = relu(scale * conv(x; w) + bias), one im2col matmul per step.
# ----------------------------------------------------------------------------
def _conv_kernel(x_ref, w_ref, sb_ref, o_ref, patch_ref, *, H, W, Cin, b_tile):
    # x_ref    : (b_tile, Cin, H*W)   spatially flattened NCHW input (unpadded)
    # w_ref    : (Cout, 9*Cin)        UNscaled im2col weight (grid-resident)
    # sb_ref   : (Cout, 2)            col 0 = bias, col 1 = scale
    # o_ref    : (b_tile, Cout, H*W)  lane-dense output
    # patch_ref: (9*Cin, b_tile*H*W)  K-major im2col scratch
    HW = H * W
    # Per-tap validity masks (image-independent; hoisted out of the image loop).
    pos = lax.broadcasted_iota(jnp.int32, (1, HW), 1)
    row = pos // W
    col = pos % W
    masks = []
    for kh in range(3):
        for kw in range(3):
            dh, dw = kh - 1, kw - 1
            conds = []
            if dh < 0:
                conds.append(row >= -dh)
            if dh > 0:
                conds.append(row < H - dh)
            if dw < 0:
                conds.append(col >= -dw)
            if dw > 0:
                conds.append(col < W - dw)
            m = None
            for c in conds:
                m = c if m is None else (m & c)
            masks.append(m)

    # K-major patch build: every tap write is a full-lane-width (Cin, HW) store;
    # zero-padding is realised by the masks (no padded copy of x anywhere).
    for i in range(b_tile):
        x_i = x_ref[i]                                      # (Cin, HW)
        for kh in range(3):
            for kw in range(3):
                dh, dw = kh - 1, kw - 1
                t = kh * 3 + kw
                s = dh * W + dw                             # flat window shift
                v = x_i if s == 0 else pltpu.roll(x_i, shift=(-s) % HW, axis=1)
                if masks[t] is not None:
                    v = jnp.where(masks[t], v, 0.0)
                patch_ref[t * Cin:(t + 1) * Cin, i * HW:(i + 1) * HW] = v

    # Single MXU push, K = 9*Cin, N = b_tile*HW; no implicit operand transpose.
    acc = jnp.dot(w_ref[...], patch_ref[...],
                  preferred_element_type=jnp.float32)       # (Cout, b_tile*HW)
    bias = sb_ref[:, 0:1]                                   # (Cout, 1)
    scale = sb_ref[:, 1:2]                                  # (Cout, 1)
    y = jnp.maximum(acc * scale + bias, 0.0).astype(o_ref.dtype)
    for i in range(b_tile):
        o_ref[i] = y[:, i * HW:(i + 1) * HW]                # 256-lane-aligned


def _pick_batch_tile(n, max_imgs=8):
    t = min(n, max_imgs)
    while n % t:
        t -= 1
    return t


def conv_scale_bias_relu(x_flat, w_im2col, sb, *, H, W, batch_tile=None):
    # x_flat: (N, Cin, H*W); w_im2col: (Cout, 9*Cin); sb: (Cout, 2)
    N, cin, HW = x_flat.shape
    cout = w_im2col.shape[0]
    if batch_tile is None:
        batch_tile = _pick_batch_tile(N)
    kernel = functools.partial(_conv_kernel, H=H, W=W, Cin=cin,
                               b_tile=batch_tile)
    return pl.pallas_call(
        kernel,
        out_shape=jax.ShapeDtypeStruct((N, cout, HW), jnp.float32),
        grid=(N // batch_tile,),
        in_specs=[
            pl.BlockSpec((batch_tile, cin, HW), lambda b: (b, 0, 0)),
            pl.BlockSpec((cout, 9 * cin), lambda b: (0, 0)),
            pl.BlockSpec((cout, 2), lambda b: (0, 0)),
        ],
        out_specs=pl.BlockSpec((batch_tile, cout, HW), lambda b: (b, 0, 0)),
        scratch_shapes=[pltpu.VMEM((9 * cin, batch_tile * HW), jnp.float32)],
        compiler_params=pltpu.CompilerParams(
            dimension_semantics=("parallel",)),
    )(x_flat, w_im2col, sb)


# ----------------------------------------------------------------------------
# Full forward (force_passport=True path; scale/bias params are None).
# ----------------------------------------------------------------------------
def passport_block_forward(x_nchw, conv_w_oihw, w_enc, w_dec,
                           key_nchw, skey_nchw):
    N, cin, H, W = x_nchw.shape
    cout = conv_w_oihw.shape[0]

    # im2col weight, column order (kh, kw, cin): matches both kernels' patches.
    w_t = jnp.transpose(conv_w_oihw, (0, 2, 3, 1)).reshape(cout, 9 * cin)

    # --- passport path (kernel A): [bias | scale] columns --------------------
    # Batch-averaging keys first is exact (conv + spatial mean are linear) and
    # matches the module's .mean(dim=0).  Keys stacked on axis 1 so kernel A
    # produces (Cout, 2) that kernel B consumes directly.
    keys = jnp.stack([jnp.mean(key_nchw, axis=0),
                      jnp.mean(skey_nchw, axis=0)], axis=1)   # (Cin, 2, H, W)
    sb = passport_scale_bias(keys, w_t, w_enc, w_dec)         # (Cout, 2)

    # --- main path (kernel B) ------------------------------------------------
    # Single relayout pass over x (replaces the previous transpose + pad = two
    # passes); padding and the scale/bias epilogue live inside the kernel.
    x_flat = x_nchw.reshape(N, cin, H * W)
    y_flat = conv_scale_bias_relu(x_flat, w_t, sb, H=H, W=W)  # (N, Cout, H*W)

    # NOTE: this reshape is a small relayout copy (256-lane minor dim split to
    # (16,16)), not free; consumers that accept (N, Cout, H*W) should skip it.
    y = y_flat.reshape(N, cout, H, W)

    scale = sb[:, 1].reshape(1, cout, 1, 1)
    bias = sb[:, 0].reshape(1, cout, 1, 1)
    return y, scale, bias


# ----------------------------------------------------------------------------
# Pure-JAX reference (for correctness check only).
# ----------------------------------------------------------------------------
def reference_forward(x, conv_w, w_enc, w_dec, key, skey):
    def conv(v):
        return lax.conv_general_dilated(
            v, conv_w, window_strides=(1, 1), padding=((1, 1), (1, 1)),
            dimension_numbers=("NCHW", "OIHW", "NCHW"))

    def fc_path(v_nchw):
        m = jnp.mean(conv(v_nchw), axis=(0, 2, 3)).reshape(1, -1)   # (1, C)
        e = m @ w_enc.T
        e = jnp.where(e > 0, e, 0.01 * e)
        return e @ w_dec.T                                          # (1, C)

    C = conv_w.shape[0]
    scale = fc_path(skey).reshape(1, C, 1, 1)
    bias = fc_path(key).reshape(1, C, 1, 1)
    y = jnp.maximum(scale * conv(x) + bias, 0.0)
    return y, scale, bias


if __name__ == "__main__":
    N, Cin, Cout, H, W = 2, 4, 8, 16, 16
    root = jax.random.PRNGKey(0)
    k_x, k_w, k_enc, k_dec, k_key, k_skey = jax.random.split(root, 6)

    x = jax.random.normal(k_x, (N, Cin, H, W), dtype=jnp.float32)

    # conv weight: kaiming_normal_(mode='fan_out', relu): std = sqrt(2/fan_out)
    fan_out = Cout * 3 * 3
    conv_w = jax.random.normal(k_w, (Cout, Cin, 3, 3), dtype=jnp.float32) \
        * jnp.sqrt(2.0 / fan_out)

    # encode: Linear(Cout, Cout//4, bias=False); decode: Linear(Cout//4, Cout, bias=False)
    w_enc = jax.random.uniform(k_enc, (Cout // 4, Cout), dtype=jnp.float32,
                               minval=-1.0, maxval=1.0) / jnp.sqrt(Cout)
    w_dec = jax.random.uniform(k_dec, (Cout, Cout // 4), dtype=jnp.float32,
                               minval=-1.0, maxval=1.0) / jnp.sqrt(Cout // 4)

    # key / skey ~ U(-1, 1), batch dim forced to 1 (generate_key semantics)
    key = jax.random.uniform(k_key, (1, Cin, H, W), dtype=jnp.float32,
                             minval=-1.0, maxval=1.0)
    skey = jax.random.uniform(k_skey, (1, Cin, H, W), dtype=jnp.float32,
                              minval=-1.0, maxval=1.0)

    y, scale, bias = passport_block_forward(x, conv_w, w_enc, w_dec, key, skey)
    y = jax.block_until_ready(y)
    scale = jax.block_until_ready(scale)
    bias = jax.block_until_ready(bias)

    y_ref, scale_ref, bias_ref = reference_forward(
        x, conv_w, w_enc, w_dec, key, skey)

    assert y.shape == (N, Cout, H, W)
    assert scale.shape == (1, Cout, 1, 1) and bias.shape == (1, Cout, 1, 1)
    assert jnp.allclose(y, y_ref, atol=1e-4, rtol=1e-4)
    assert jnp.allclose(scale, scale_ref, atol=2e-5, rtol=1e-4)
    assert jnp.allclose(bias, bias_ref, atol=2e-5, rtol=1e-4)

    print("KERNEL_OK")
</pallas_src>

<mosaic_0001>
module attributes {stable_mosaic.version = 11 : i64} {
  func.func @_passport_kernel(%arg0: i32, %arg1: memref<4x2x16x16xf32, #tpu.memory_space<vmem>>, %arg2: memref<8x36xf32, #tpu.memory_space<vmem>>, %arg3: memref<2x8xf32, #tpu.memory_space<vmem>>, %arg4: memref<8x2xf32, #tpu.memory_space<vmem>>, %arg5: memref<8x2xf32, #tpu.memory_space<vmem>>, %arg6: memref<36x2xf32, #tpu.memory_space<vmem>>) attributes {dimension_semantics = [#tpu.dimension_semantics<arbitrary>], iteration_bounds = array<i64: 1>, scalar_prefetch = 0 : i64, scratch_operands = 1 : i64, tpu.core_type = #tpu.core_type<tc>, window_params = [{pipeline_mode = #tpu.pipeline_mode<synchronous>, transform_indices = @transform_0, window_bounds = array<i64: 4, 2, 16, 16>}, {pipeline_mode = #tpu.pipeline_mode<synchronous>, transform_indices = @transform_1, window_bounds = array<i64: 8, 36>}, {pipeline_mode = #tpu.pipeline_mode<synchronous>, transform_indices = @transform_2, window_bounds = array<i64: 2, 8>}, {pipeline_mode = #tpu.pipeline_mode<synchronous>, transform_indices = @transform_3, window_bounds = array<i64: 8, 2>}, {pipeline_mode = #tpu.pipeline_mode<synchronous>, transform_indices = @transform_4, window_bounds = array<i64: 8, 2>}]} {
    %c0 = arith.constant 0 : index
    %c0_0 = arith.constant 0 : index
    %c0_1 = arith.constant 0 : index
    %c0_2 = arith.constant 0 : index
    %0 = vector.load %arg1[%c0, %c0_0, %c0_1, %c0_2] : memref<4x2x16x16xf32, #tpu.memory_space<vmem>>, vector<4x2x15x15xf32>
    %cst = arith.constant dense<0.000000e+00> : vector<4x2x15xf32>
    %1 = vector.multi_reduction <add>, %0, %cst [3] : vector<4x2x15x15xf32> to vector<4x2x15xf32>
    %cst_3 = arith.constant dense<0.000000e+00> : vector<4x2xf32>
    %2 = vector.multi_reduction <add>, %1, %cst_3 [2] : vector<4x2x15xf32> to vector<4x2xf32>
    %cst_4 = arith.constant 3.906250e-03 : f32
    %3 = vector.broadcast %cst_4 : f32 to vector<4x2xf32>
    %4 = arith.mulf %2, %3 : vector<4x2xf32>
    %c0_5 = arith.constant 0 : index
    %c0_6 = arith.constant 0 : index
    %5 = vector.load %arg6[%c0_5, %c0_6] : memref<36x2xf32, #tpu.memory_space<vmem>>, vector<4x2xf32>
    tpu.vector_store %arg6[%c0_5, %c0_6], %4 {strides = array<i32>} : memref<36x2xf32, #tpu.memory_space<vmem>>, vector<4x2xf32>,
    %c0_7 = arith.constant 0 : index
    %c0_8 = arith.constant 0 : index
    %c0_9 = arith.constant 0 : index
    %c0_10 = arith.constant 0 : index
    %6 = vector.load %arg1[%c0_7, %c0_8, %c0_9, %c0_10] : memref<4x2x16x16xf32, #tpu.memory_space<vmem>>, vector<4x2x15x16xf32>
    %cst_11 = arith.constant dense<0.000000e+00> : vector<4x2x15xf32>
    %7 = vector.multi_reduction <add>, %6, %cst_11 [3] : vector<4x2x15x16xf32> to vector<4x2x15xf32>
    %cst_12 = arith.constant dense<0.000000e+00> : vector<4x2xf32>
    %8 = vector.multi_reduction <add>, %7, %cst_12 [2] : vector<4x2x15xf32> to vector<4x2xf32>
    %cst_13 = arith.constant 3.906250e-03 : f32
    %9 = vector.broadcast %cst_13 : f32 to vector<4x2xf32>
    %10 = arith.mulf %8, %9 : vector<4x2xf32>
    %c4 = arith.constant 4 : index
    %c0_14 = arith.constant 0 : index
    %11 = vector.load %arg6[%c4, %c0_14] : memref<36x2xf32, #tpu.memory_space<vmem>>, vector<4x2xf32>
    tpu.vector_store %arg6[%c4, %c0_14], %10 {strides = array<i32>} : memref<36x2xf32, #tpu.memory_space<vmem>>, vector<4x2xf32>,
    %c0_15 = arith.constant 0 : index
    %c0_16 = arith.constant 0 : index
    %c0_17 = arith.constant 0 : index
    %c1 = arith.constant 1 : index
    %12 = vector.load %arg1[%c0_15, %c0_16, %c0_17, %c1] : memref<4x2x16x16xf32, #tpu.memory_space<vmem>>, vector<4x2x15x15xf32>
    %cst_18 = arith.constant dense<0.000000e+00> : vector<4x2x15xf32>
    %13 = vector.multi_reduction <add>, %12, %cst_18 [3] : vector<4x2x15x15xf32> to vector<4x2x15xf32>
    %cst_19 = arith.constant dense<0.000000e+00> : vector<4x2xf32>
    %14 = vector.multi_reduction <add>, %13, %cst_19 [2] : vector<4x2x15xf32> to vector<4x2xf32>
    %cst_20 = arith.constant 3.906250e-03 : f32
    %15 = vector.broadcast %cst_20 : f32 to vector<4x2xf32>
    %16 = arith.mulf %14, %15 : vector<4x2xf32>
    %c8 = arith.constant 8 : index
    %c0_21 = arith.constant 0 : index
    %17 = vector.load %arg6[%c8, %c0_21] : memref<36x2xf32, #tpu.memory_space<vmem>>, vector<4x2xf32>
    tpu.vector_store %arg6[%c8, %c0_21], %16 {strides = array<i32>} : memref<36x2xf32, #tpu.memory_space<vmem>>, vector<4x2xf32>,
    %c0_22 = arith.constant 0 : index
    %c0_23 = arith.constant 0 : index
    %c0_24 = arith.constant 0 : index
    %c0_25 = arith.constant 0 : index
    %18 = vector.load %arg1[%c0_22, %c0_23, %c0_24, %c0_25] : memref<4x2x16x16xf32, #tpu.memory_space<vmem>>, vector<4x2x16x15xf32>
    %cst_26 = arith.constant dense<0.000000e+00> : vector<4x2x16xf32>
    %19 = vector.multi_reduction <add>, %18, %cst_26 [3] : vector<4x2x16x15xf32> to vector<4x2x16xf32>
    %cst_27 = arith.constant dense<0.000000e+00> : vector<4x2xf32>
    %20 = vector.multi_reduction <add>, %19, %cst_27 [2] : vector<4x2x16xf32> to vector<4x2xf32>
    %cst_28 = arith.constant 3.906250e-03 : f32
    %21 = vector.broadcast %cst_28 : f32 to vector<4x2xf32>
    %22 = arith.mulf %20, %21 : vector<4x2xf32>
    %c12 = arith.constant 12 : index
    %c0_29 = arith.constant 0 : index
    %23 = vector.load %arg6[%c12, %c0_29] : memref<36x2xf32, #tpu.memory_space<vmem>>, vector<4x2xf32>
    tpu.vector_store %arg6[%c12, %c0_29], %22 {strides = array<i32>} : memref<36x2xf32, #tpu.memory_space<vmem>>, vector<4x2xf32>,
    %c0_30 = arith.constant 0 : index
    %c0_31 = arith.constant 0 : index
    %c0_32 = arith.constant 0 : index
    %c0_33 = arith.constant 0 : index
    %24 = vector.load %arg1[%c0_30, %c0_31, %c0_32, %c0_33] : memref<4x2x16x16xf32, #tpu.memory_space<vmem>>, vector<4x2x16x16xf32>
    %cst_34 = arith.constant dense<0.000000e+00> : vector<4x2x16xf32>
    %25 = vector.multi_reduction <add>, %24, %cst_34 [3] : vector<4x2x16x16xf32> to vector<4x2x16xf32>
    %cst_35 = arith.constant dense<0.000000e+00> : vector<4x2xf32>
    %26 = vector.multi_reduction <add>, %25, %cst_35 [2] : vector<4x2x16xf32> to vector<4x2xf32>
    %cst_36 = arith.constant 3.906250e-03 : f32
    %27 = vector.broadcast %cst_36 : f32 to vector<4x2xf32>
    %28 = arith.mulf %26, %27 : vector<4x2xf32>
    %c16 = arith.constant 16 : index
    %c0_37 = arith.constant 0 : index
    %29 = vector.load %arg6[%c16, %c0_37] : memref<36x2xf32, #tpu.memory_space<vmem>>, vector<4x2xf32>
    tpu.vector_store %arg6[%c16, %c0_37], %28 {strides = array<i32>} : memref<36x2xf32, #tpu.memory_space<vmem>>, vector<4x2xf32>,
    %c0_38 = arith.constant 0 : index
    %c0_39 = arith.constant 0 : index
    %c0_40 = arith.constant 0 : index
    %c1_41 = arith.constant 1 : index
    %30 = vector.load %arg1[%c0_38, %c0_39, %c0_40, %c1_41] : memref<4x2x16x16xf32, #tpu.memory_space<vmem>>, vector<4x2x16x15xf32>
    %cst_42 = arith.constant dense<0.000000e+00> : vector<4x2x16xf32>
    %31 = vector.multi_reduction <add>, %30, %cst_42 [3] : vector<4x2x16x15xf32> to vector<4x2x16xf32>
    %cst_43 = arith.constant dense<0.000000e+00> : vector<4x2xf32>
    %32 = vector.multi_reduction <add>, %31, %cst_43 [2] : vector<4x2x16xf32> to vector<4x2xf32>
    %cst_44 = arith.constant 3.906250e-03 : f32
    %33 = vector.broadcast %cst_44 : f32 to vector<4x2xf32>
    %34 = arith.mulf %32, %33 : vector<4x2xf32>
    %c20 = arith.constant 20 : index
    %c0_45 = arith.constant 0 : index
    %35 = vector.load %arg6[%c20, %c0_45] : memref<36x2xf32, #tpu.memory_space<vmem>>, vector<4x2xf32>
    tpu.vector_store %arg6[%c20, %c0_45], %34 {strides = array<i32>} : memref<36x2xf32, #tpu.memory_space<vmem>>, vector<4x2xf32>,
    %c0_46 = arith.constant 0 : index
    %c0_47 = arith.constant 0 : index
    %c1_48 = arith.constant 1 : index
    %c0_49 = arith.constant 0 : index
    %36 = vector.load %arg1[%c0_46, %c0_47, %c1_48, %c0_49] : memref<4x2x16x16xf32, #tpu.memory_space<vmem>>, vector<4x2x15x15xf32>
    %cst_50 = arith.constant dense<0.000000e+00> : vector<4x2x15xf32>
    %37 = vector.multi_reduction <add>, %36, %cst_50 [3] : vector<4x2x15x15xf32> to vector<4x2x15xf32>
    %cst_51 = arith.constant dense<0.000000e+00> : vector<4x2xf32>
    %38 = vector.multi_reduction <add>, %37, %cst_51 [2] : vector<4x2x15xf32> to vector<4x2xf32>
    %cst_52 = arith.constant 3.906250e-03 : f32
    %39 = vector.broadcast %cst_52 : f32 to vector<4x2xf32>
    %40 = arith.mulf %38, %39 : vector<4x2xf32>
    %c24 = arith.constant 24 : index
    %c0_53 = arith.constant 0 : index
    %41 = vector.load %arg6[%c24, %c0_53] : memref<36x2xf32, #tpu.memory_space<vmem>>, vector<4x2xf32>
    tpu.vector_store %arg6[%c24, %c0_53], %40 {strides = array<i32>} : memref<36x2xf32, #tpu.memory_space<vmem>>, vector<4x2xf32>,
    %c0_54 = arith.constant 0 : index
    %c0_55 = arith.constant 0 : index
    %c1_56 = arith.constant 1 : index
    %c0_57 = arith.constant 0 : index
    %42 = vector.load %arg1[%c0_54, %c0_55, %c1_56, %c0_57] : memref<4x2x16x16xf32, #tpu.memory_space<vmem>>, vector<4x2x15x16xf32>
    %cst_58 = arith.constant dense<0.000000e+00> : vector<4x2x15xf32>
    %43 = vector.multi_reduction <add>, %42, %cst_58 [3] : vector<4x2x15x16xf32> to vector<4x2x15xf32>
    %cst_59 = arith.constant dense<0.000000e+00> : vector<4x2xf32>
    %44 = vector.multi_reduction <add>, %43, %cst_59 [2] : vector<4x2x15xf32> to vector<4x2xf32>
    %cst_60 = arith.constant 3.906250e-03 : f32
    %45 = vector.broadcast %cst_60 : f32 to vector<4x2xf32>
    %46 = arith.mulf %44, %45 : vector<4x2xf32>
    %c28 = arith.constant 28 : index
    %c0_61 = arith.constant 0 : index
    %47 = vector.load %arg6[%c28, %c0_61] : memref<36x2xf32, #tpu.memory_space<vmem>>, vector<4x2xf32>
    tpu.vector_store %arg6[%c28, %c0_61], %46 {strides = array<i32>} : memref<36x2xf32, #tpu.memory_space<vmem>>, vector<4x2xf32>,
    %c0_62 = arith.constant 0 : index
    %c0_63 = arith.constant 0 : index
    %c1_64 = arith.constant 1 : index
    %c1_65 = arith.constant 1 : index
    %48 = vector.load %arg1[%c0_62, %c0_63, %c1_64, %c1_65] : memref<4x2x16x16xf32, #tpu.memory_space<vmem>>, vector<4x2x15x15xf32>
    %cst_66 = arith.constant dense<0.000000e+00> : vector<4x2x15xf32>
    %49 = vector.multi_reduction <add>, %48, %cst_66 [3] : vector<4x2x15x15xf32> to vector<4x2x15xf32>
    %cst_67 = arith.constant dense<0.000000e+00> : vector<4x2xf32>
    %50 = vector.multi_reduction <add>, %49, %cst_67 [2] : vector<4x2x15xf32> to vector<4x2xf32>
    %cst_68 = arith.constant 3.906250e-03 : f32
    %51 = vector.broadcast %cst_68 : f32 to vector<4x2xf32>
    %52 = arith.mulf %50, %51 : vector<4x2xf32>
    %c32 = arith.constant 32 : index
    %c0_69 = arith.constant 0 : index
    %53 = vector.load %arg6[%c32, %c0_69] : memref<36x2xf32, #tpu.memory_space<vmem>>, vector<4x2xf32>
    tpu.vector_store %arg6[%c32, %c0_69], %52 {strides = array<i32>} : memref<36x2xf32, #tpu.memory_space<vmem>>, vector<4x2xf32>,
    %c0_70 = arith.constant 0 : index
    %c0_71 = arith.constant 0 : index
    %54 = vector.load %arg2[%c0_70, %c0_71] : memref<8x36xf32, #tpu.memory_space<vmem>>, vector<8x36xf32>
    %c0_72 = arith.constant 0 : index
    %c0_73 = arith.constant 0 : index
    %55 = vector.load %arg6[%c0_72, %c0_73] : memref<36x2xf32, #tpu.memory_space<vmem>>, vector<36x2xf32>
    %cst_74 = arith.constant dense<0.000000e+00> : vector<8x2xf32>
    %56 = tpu.matmul %54, %55, %cst_74 {dimension_numbers = #tpu.dot_dimension_numbers<[1], [0], [0], [1], [0, 0, 1, 1], [], []>} : vector<8x36xf32>, vector<36x2xf32>, vector<8x2xf32> -> vector<8x2xf32>
    %c0_75 = arith.constant 0 : index
    %c0_76 = arith.constant 0 : index
    %57 = vector.load %arg3[%c0_75, %c0_76] : memref<2x8xf32, #tpu.memory_space<vmem>>, vector<2x8xf32>
    %cst_77 = arith.constant dense<0.000000e+00> : vector<2x2xf32>
    %58 = tpu.matmul %57, %56, %cst_77 {dimension_numbers = #tpu.dot_dimension_numbers<[1], [0], [0], [1], [0, 0, 1, 1], [], []>} : vector<2x8xf32>, vector<8x2xf32>, vector<2x2xf32> -> vector<2x2xf32>
    %cst_78 = arith.constant 0.000000e+00 : f32
    %59 = vector.broadcast %cst_78 : f32 to vector<2x2xf32>
    %60 = arith.cmpf ogt, %58, %59 : vector<2x2xf32>
    %cst_79 = arith.constant 0.00999999977 : f32
    %61 = vector.broadcast %cst_79 : f32 to vector<2x2xf32>
    %62 = arith.mulf %61, %58 : vector<2x2xf32>
    %63 = arith.select %60, %58, %62 : vector<2x2xi1>, vector<2x2xf32>
    %c0_80 = arith.constant 0 : index
    %c0_81 = arith.constant 0 : index
    %64 = vector.load %arg4[%c0_80, %c0_81] : memref<8x2xf32, #tpu.memory_space<vmem>>, vector<8x2xf32>
    %cst_82 = arith.constant dense<0.000000e+00> : vector<8x2xf32>
    %65 = tpu.matmul %64, %63, %cst_82 {dimension_numbers = #tpu.dot_dimension_numbers<[1], [0], [0], [1], [0, 0, 1, 1], [], []>} : vector<8x2xf32>, vector<2x2xf32>, vector<8x2xf32> -> vector<8x2xf32>
    %c0_83 = arith.constant 0 : index
    %c0_84 = arith.constant 0 : index
    %66 = vector.load %arg5[%c0_83, %c0_84] : memref<8x2xf32, #tpu.memory_space<vmem>>, vector<8x2xf32>
    tpu.vector_store %arg5[%c0_83, %c0_84], %65 {strides = array<i32>} : memref<8x2xf32, #tpu.memory_space<vmem>>, vector<8x2xf32>,
    return
  }
  func.func @transform_0(%arg0: i32) -> (i32, i32, i32, i32) {
    %c0_i32 = arith.constant 0 : i32
    %c0_i32_0 = arith.constant 0 : i32
    %c0_i32_1 = arith.constant 0 : i32
    %c0_i32_2 = arith.constant 0 : i32
    %c0_i32_3 = arith.constant 0 : i32
    return %c0_i32, %c0_i32_0, %c0_i32_1, %c0_i32_2 : i32, i32, i32, i32
  }
  func.func @transform_1(%arg0: i32) -> (i32, i32) {
    %c0_i32 = arith.constant 0 : i32
    %c0_i32_0 = arith.constant 0 : i32
    %c0_i32_1 = arith.constant 0 : i32
    return %c0_i32, %c0_i32_0 : i32, i32
  }
  func.func @transform_2(%arg0: i32) -> (i32, i32) {
    %c0_i32 = arith.constant 0 : i32
    %c0_i32_0 = arith.constant 0 : i32
    %c0_i32_1 = arith.constant 0 : i32
    return %c0_i32, %c0_i32_0 : i32, i32
  }
  func.func @transform_3(%arg0: i32) -> (i32, i32) {
    %c0_i32 = arith.constant 0 : i32
    %c0_i32_0 = arith.constant 0 : i32
    %c0_i32_1 = arith.constant 0 : i32
    return %c0_i32, %c0_i32_0 : i32, i32
  }
  func.func @transform_4(%arg0: i32) -> (i32, i32) {
    %c0_i32 = arith.constant 0 : i32
    %c0_i32_0 = arith.constant 0 : i32
    %c0_i32_1 = arith.constant 0 : i32
    return %c0_i32, %c0_i32_0 : i32, i32
  }
}

</mosaic_0001>

<llo_original>
// kernel: tpu_custom_call.1
$region0: #{tpu_custom_call.1}
  #allocation0 [shape = 'u32[]', space=smem, size = 0x4, offset = 0x4, fixed_abs, tag = 'smem constant byte address 0x4 - core index']
  #allocation1 [shape = 'u32[144,128]{1,0:T(1,128)}', space=vmem, size = 0x12000, scoped, tag = 'internal scratch']
  #allocation2 [shape = 'f32[36,2]{1,0:T(8,128)}', space=vmem, size = 0x5000, scoped, tag = 'scratch operand']
  %s0 = inlined_call_operand.hbm [shape: f32[4,2,16,16], index: 0, kind: input, shape index: {}]
  %s1 = inlined_call_operand.vmem [shape: f32[8,36], index: 1, kind: input, shape index: {}]
  %s2 = inlined_call_operand.vmem [shape: f32[2,8], index: 2, kind: input, shape index: {}]
  %s3 = inlined_call_operand.vmem [shape: f32[8,2], index: 3, kind: input, shape index: {}]
  %s4 = inlined_call_operand.vmem [shape: f32[8,2], index: 4, kind: output, shape index: {}]
  %s5 = sld [smem:[#allocation0]]
  $region30: #{tpu_custom_call.1} parent=0
    _
  %s7 = ssub.s32 1, %s5
  %s8 = scalar_select 0, %s7, %s5
  $region1: #{tpu_custom_call.1} parent=0
    #allocation3 [shape = 'u8[65536]{0}', space=vmem, size = 0x10000, scoped, tag = 'input window, operand 0, single buffered']
    #allocation4 [shape = 's32[1]{0}', space=sflag, size = 0x4, scoped, tag = 'scoped memory for tpu_custom_call.1']
    %9 = vsyncpa [#allocation4], 0
    // Predicated region
    $region2: #{tpu_custom_call.1} parent=1 // pred_check
      _
    $region3: #{tpu_custom_call.1} parent=1 // pred_check_branch
      %11 = sbr.rel (0) target = $region5
    $region4: #{tpu_custom_call.1} parent=1 // pred_region
      %s13 = ssub.s32 2048, 2048
      %14 = vsyncadd [#allocation4], %s13
      %s15 = sshll.u32 [#allocation3], 4
      %s16 = int_to_ptr.vmem [resolvable:$true] %s15
      %21 = dma.hbm_to_vmem [thread:$0]  %s0, 2048, %s16, [#allocation4], 128, 128, 8
    $region5: #{tpu_custom_call.1} parent=1 // pred_fallthru
      _
    // Predicated region
    $region6: #{tpu_custom_call.1} parent=1 // pred_check
      _
    $region7: #{tpu_custom_call.1} parent=1 // pred_check_branch
      %23 = sbr.rel (0) target = $region9
    $region8: #{tpu_custom_call.1} parent=1 // pred_region
      _
    $region9: #{tpu_custom_call.1} parent=1 // pred_fallthru
      _
    // Predicated region
    $region10: #{tpu_custom_call.1} parent=1 // pred_check
      _
    $region11: #{tpu_custom_call.1} parent=1 // pred_check_branch
      %25 = sbr.rel (0) target = $region13
    $region12: #{tpu_custom_call.1} parent=1 // pred_region
      _
    $region13: #{tpu_custom_call.1} parent=1 // pred_fallthru
      _
    // Predicated region
    $region14: #{tpu_custom_call.1} parent=1 // pred_check
      _
    $region15: #{tpu_custom_call.1} parent=1 // pred_check_branch
      %27 = sbr.rel (0) target = $region17
    $region16: #{tpu_custom_call.1} parent=1 // pred_region
      _
    $region17: #{tpu_custom_call.1} parent=1 // pred_fallthru
      _
    // Predicated region
    $region18: #{tpu_custom_call.1} parent=1 // pred_check
      _
    $region19: #{tpu_custom_call.1} parent=1 // pred_check_branch
      %29 = sbr.rel (0) target = $region21
    $region20: #{tpu_custom_call.1} parent=1 // pred_region
      %30 = dma.done [#allocation4], 2048
    $region21: #{tpu_custom_call.1} parent=1 // pred_fallthru
      _
    %v31 = vld [vmem:[#allocation3] sm:$0xff]
    %v32 = vld [vmem:[#allocation3 + $0x8] sm:$0x7f]
    %v33 = vld [vmem:[#allocation3 + $0x10] sm:$0xff]
    %v34 = vld [vmem:[#allocation3 + $0x18] sm:$0x7f]
    %v35 = vld [vmem:[#allocation3 + $0x20] sm:$0xff]
    %v36 = vld [vmem:[#allocation3 + $0x28] sm:$0x7f]
    %v37 = vld [vmem:[#allocation3 + $0x30] sm:$0xff]
    %v38 = vld [vmem:[#allocation3 + $0x38] sm:$0x7f]
    %v39 = vld [vmem:[#allocation3 + $0x40] sm:$0xff]
    %v40 = vld [vmem:[#allocation3 + $0x48] sm:$0x7f]
    %v41 = vld [vmem:[#allocation3 + $0x50] sm:$0xff]
    %v42 = vld [vmem:[#allocation3 + $0x58] sm:$0x7f]
    %v43 = vld [vmem:[#allocation3 + $0x60] sm:$0xff]
    %v44 = vld [vmem:[#allocation3 + $0x68] sm:$0x7f]
    %v45 = vld [vmem:[#allocation3 + $0x70] sm:$0xff]
    %v46 = vld [vmem:[#allocation3 + $0x78] sm:$0x7f]
    %vm47 = vcmask 121856
    %v48 = vsel %vm47, %v31, 0.0
    %49 = vadd.xlane.f32.xlu0 %v48
    %v50 = vpop.xlane.xlu0 %49
    %vm51 = vcmask 120832
    %v52 = vsel %vm51, %v32, 0.0
    %53 = vadd.xlane.f32.xlu0 %v52
    %v54 = vpop.xlane.xlu0 %53
    %v55 = vsel %vm47, %v33, 0.0
    %56 = vadd.xlane.f32.xlu0 %v55
    %v57 = vpop.xlane.xlu0 %56
    %v58 = vsel %vm51, %v34, 0.0
    %59 = vadd.xlane.f32.xlu0 %v58
    %v60 = vpop.xlane.xlu0 %59
    %v61 = vsel %vm47, %v35, 0.0
    %62 = vadd.xlane.f32.xlu0 %v61
    %v63 = vpop.xlane.xlu0 %62
    %v64 = vsel %vm51, %v36, 0.0
    %65 = vadd.xlane.f32.xlu0 %v64
    %v66 = vpop.xlane.xlu0 %65
    %v67 = vsel %vm47, %v37, 0.0
    %68 = vadd.xlane.f32.xlu0 %v67
    %v69 = vpop.xlane.xlu0 %68
    %v70 = vsel %vm51, %v38, 0.0
    %71 = vadd.xlane.f32.xlu0 %v70
    %v72 = vpop.xlane.xlu0 %71
    %v73 = vsel %vm47, %v39, 0.0
    %74 = vadd.xlane.f32.xlu0 %v73
    %v75 = vpop.xlane.xlu0 %74
    %v76 = vsel %vm51, %v40, 0.0
    %77 = vadd.xlane.f32.xlu0 %v76
    %v78 = vpop.xlane.xlu0 %77
    %v79 = vsel %vm47, %v41, 0.0
    %80 = vadd.xlane.f32.xlu0 %v79
    %v81 = vpop.xlane.xlu0 %80
    %v82 = vsel %vm51, %v42, 0.0
    %83 = vadd.xlane.f32.xlu0 %v82
    %v84 = vpop.xlane.xlu0 %83
    %v85 = vsel %vm47, %v43, 0.0
    %86 = vadd.xlane.f32.xlu0 %v85
    %v87 = vpop.xlane.xlu0 %86
    %v88 = vsel %vm51, %v44, 0.0
    %89 = vadd.xlane.f32.xlu0 %v88
    %v90 = vpop.xlane.xlu0 %89
    %v91 = vsel %vm47, %v45, 0.0
    %92 = vadd.xlane.f32.xlu0 %v91
    %v93 = vpop.xlane.xlu0 %92
    %v94 = vsel %vm51, %v46, 0.0
    %95 = vadd.xlane.f32.xlu0 %v94
    %v96 = vpop.xlane.xlu0 %95
    %v113 = vlaneseq
    %v114 = vand.u32 %v113, 127
    %v115 = vlaneseq
    %v116 = vshrl.u32 %v115, 7
    %v117 = vsub.s32 %v114, %v116
    %v118 = vrot.slane %v50, %v117
    %v119 = vadd.s32 %v114, 4294967288
    %v120 = vlaneseq
    %v121 = vshrl.u32 %v120, 7
    %v122 = vsub.s32 %v119, %v121
    %v123 = vrot.slane %v54, %v122
    %vm124 = vcmask 130112
    %v125 = vsel %vm124, %v123, %v118
    %v126 = vlaneseq
    %v127 = vshrl.u32 %v126, 7
    %v128 = vsub.s32 %v114, %v127
    %v129 = vrot.slane %v57, %v128
    %v130 = vlaneseq
    %v131 = vshrl.u32 %v130, 7
    %v132 = vsub.s32 %v119, %v131
    %v133 = vrot.slane %v60, %v132
    %v134 = vsel %vm124, %v133, %v129
    %v135 = vlaneseq
    %v136 = vshrl.u32 %v135, 7
    %v137 = vsub.s32 %v114, %v136
    %v138 = vrot.slane %v63, %v137
    %v139 = vlaneseq
    %v140 = vshrl.u32 %v139, 7
    %v141 = vsub.s32 %v119, %v140
    %v142 = vrot.slane %v66, %v141
    %v143 = vsel %vm124, %v142, %v138
    %v144 = vlaneseq
    %v145 = vshrl.u32 %v144, 7
    %v146 = vsub.s32 %v114, %v145
    %v147 = vrot.slane %v69, %v146
    %v148 = vlaneseq
    %v149 = vshrl.u32 %v148, 7
    %v150 = vsub.s32 %v119, %v149
    %v151 = vrot.slane %v72, %v150
    %v152 = vsel %vm124, %v151, %v147
    %v153 = vlaneseq
    %v154 = vshrl.u32 %v153, 7
    %v155 = vsub.s32 %v114, %v154
    %v156 = vrot.slane %v75, %v155
    %v157 = vlaneseq
    %v158 = vshrl.u32 %v157, 7
    %v159 = vsub.s32 %v119, %v158
    %v160 = vrot.slane %v78, %v159
    %v161 = vsel %vm124, %v160, %v156
    %v162 = vlaneseq
    %v163 = vshrl.u32 %v162, 7
    %v164 = vsub.s32 %v114, %v163
    %v165 = vrot.slane %v81, %v164
    %v166 = vlaneseq
    %v167 = vshrl.u32 %v166, 7
    %v168 = vsub.s32 %v119, %v167
    %v169 = vrot.slane %v84, %v168
    %v170 = vsel %vm124, %v169, %v165
    %v171 = vlaneseq
    %v172 = vshrl.u32 %v171, 7
    %v173 = vsub.s32 %v114, %v172
    %v174 = vrot.slane %v87, %v173
    %v175 = vlaneseq
    %v176 = vshrl.u32 %v175, 7
    %v177 = vsub.s32 %v119, %v176
    %v178 = vrot.slane %v90, %v177
    %v179 = vsel %vm124, %v178, %v174
    %v180 = vlaneseq
    %v181 = vshrl.u32 %v180, 7
    %v182 = vsub.s32 %v114, %v181
    %v183 = vrot.slane %v93, %v182
    %v184 = vlaneseq
    %v185 = vshrl.u32 %v184, 7
    %v186 = vsub.s32 %v119, %v185
    %v187 = vrot.slane %v96, %v186
    %v188 = vsel %vm124, %v187, %v183
    %vm189 = vcmask 1041409
    %v190 = vsel %vm189, %v134, %v125
    %v191 = vsel %vm189, %v152, %v143
    %v192 = vsel %vm189, %v170, %v161
    %v193 = vsel %vm189, %v188, %v179
    %vm198 = vcmask 115712
    %v199 = vsel %vm198, %v190, 0.0
    %200 = vadd.xlane.f32.xlu0 %v199
    %v201 = vpop.xlane.xlu0 %200
    %v202 = vsel %vm198, %v191, 0.0
    %203 = vadd.xlane.f32.xlu0 %v202
    %v204 = vpop.xlane.xlu0 %203
    %v205 = vsel %vm198, %v192, 0.0
    %206 = vadd.xlane.f32.xlu0 %v205
    %v207 = vpop.xlane.xlu0 %206
    %v208 = vsel %vm198, %v193, 0.0
    %209 = vadd.xlane.f32.xlu0 %v208
    %v210 = vpop.xlane.xlu0 %209
    %v211 = vmul.f32 %v201, 0.00390625
    %v212 = vmul.f32 %v204, 0.00390625
    %v213 = vmul.f32 %v207, 0.00390625
    %v214 = vmul.f32 %v210, 0.00390625
    %v219 = vlaneseq
    %v220 = vshrl.u32 %v219, 7
    %v221 = vsub.s32 %v114, %v220
    %v222 = vrot.slane %v211, %v221
    %v223 = vlaneseq
    %v224 = vshrl.u32 %v223, 7
    %v225 = vsub.s32 %v114, %v224
    %v226 = vrot.slane %v212, %v225
    %v227 = vlaneseq
    %v228 = vshrl.u32 %v227, 7
    %v229 = vsub.s32 %v114, %v228
    %v230 = vrot.slane %v213, %v229
    %v231 = vlaneseq
    %v232 = vshrl.u32 %v231, 7
    %v233 = vsub.s32 %v114, %v232
    %v234 = vrot.slane %v214, %v233
    %v235 = vsel %vm189, %v226, %v222
    %vm236 = vcmask 1042434
    %v237 = vsel %vm236, %v230, %v235
    %vm238 = vcmask 1043459
    %v239 = vsel %vm238, %v234, %v237
    %vm241 = vcmask 11264
    %242 = vst.msk [vmem:[#allocation2] sm:$0xf] %vm241, %v239
    %v243 = vld [vmem:[#allocation3] sm:$0xff]
    %v244 = vld [vmem:[#allocation3 + $0x8] sm:$0x7f]
    %v245 = vld [vmem:[#allocation3 + $0x10] sm:$0xff]
    %v246 = vld [vmem:[#allocation3 + $0x18] sm:$0x7f]
    %v247 = vld [vmem:[#allocation3 + $0x20] sm:$0xff]
    %v248 = vld [vmem:[#allocation3 + $0x28] sm:$0x7f]
    %v249 = vld [vmem:[#allocation3 + $0x30] sm:$0xff]
    %v250 = vld [vmem:[#allocation3 + $0x38] sm:$0x7f]
    %v251 = vld [vmem:[#allocation3 + $0x40] sm:$0xff]
    %v252 = vld [vmem:[#allocation3 + $0x48] sm:$0x7f]
    %v253 = vld [vmem:[#allocation3 + $0x50] sm:$0xff]
    %v254 = vld [vmem:[#allocation3 + $0x58] sm:$0x7f]
    %v255 = vld [vmem:[#allocation3 + $0x60] sm:$0xff]
    %v256 = vld [vmem:[#allocation3 + $0x68] sm:$0x7f]
    %v257 = vld [vmem:[#allocation3 + $0x70] sm:$0xff]
    %v258 = vld [vmem:[#allocation3 + $0x78] sm:$0x7f]
    %vm259 = vcmask 130048
    %v260 = vsel %vm259, %v243, 0.0
    %261 = vadd.xlane.f32.xlu0 %v260
    %v262 = vpop.xlane.xlu0 %261
    %vm263 = vcmask 129024
    %v264 = vsel %vm263, %v244, 0.0
    %265 = vadd.xlane.f32.xlu0 %v264
    %v266 = vpop.xlane.xlu0 %265
    %v267 = vsel %vm259, %v245, 0.0
    %268 = vadd.xlane.f32.xlu0 %v267
    %v269 = vpop.xlane.xlu0 %268
    %v270 = vsel %vm263, %v246, 0.0
    %271 = vadd.xlane.f32.xlu0 %v270
    %v272 = vpop.xlane.xlu0 %271
    %v273 = vsel %vm259, %v247, 0.0
    %274 = vadd.xlane.f32.xlu0 %v273
    %v275 = vpop.xlane.xlu0 %274
    %v276 = vsel %vm263, %v248, 0.0
    %277 = vadd.xlane.f32.xlu0 %v276
    %v278 = vpop.xlane.xlu0 %277
    %v279 = vsel %vm259, %v249, 0.0
    %280 = vadd.xlane.f32.xlu0 %v279
    %v281 = vpop.xlane.xlu0 %280
    %v282 = vsel %vm263, %v250, 0.0
    %283 = vadd.xlane.f32.xlu0 %v282
    %v284 = vpop.xlane.xlu0 %283
    %v285 = vsel %vm259, %v251, 0.0
    %286 = vadd.xlane.f32.xlu0 %v285
    %v287 = vpop.xlane.xlu0 %286
    %v288 = vsel %vm263, %v252, 0.0
    %289 = vadd.xlane.f32.xlu0 %v288
    %v290 = vpop.xlane.xlu0 %289
    %v291 = vsel %vm259, %v253, 0.0
    %292 = vadd.xlane.f32.xlu0 %v291
    %v293 = vpop.xlane.xlu0 %292
    %v294 = vsel %vm263, %v254, 0.0
    %295 = vadd.xlane.f32.xlu0 %v294
    %v296 = vpop.xlane.xlu0 %295
    %v297 = vsel %vm259, %v255, 0.0
    %298 = vadd.xlane.f32.xlu0 %v297
    %v299 = vpop.xlane.xlu0 %298
    %v300 = vsel %vm263, %v256, 0.0
    %301 = vadd.xlane.f32.xlu0 %v300
    %v302 = vpop.xlane.xlu0 %301
    %v303 = vsel %vm259, %v257, 0.0
    %304 = vadd.xlane.f32.xlu0 %v303
    %v305 = vpop.xlane.xlu0 %304
    %v306 = vsel %vm263, %v258, 0.0
    %307 = vadd.xlane.f32.xlu0 %v306
    %v308 = vpop.xlane.xlu0 %307
    %v325 = vlaneseq
    %v326 = vshrl.u32 %v325, 7
    %v327 = vsub.s32 %v114, %v326
    %v328 = vrot.slane %v262, %v327
    %v329 = vlaneseq
    %v330 = vshrl.u32 %v329, 7
    %v331 = vsub.s32 %v119, %v330
    %v332 = vrot.slane %v266, %v331
    %v333 = vsel %vm124, %v332, %v328
    %v334 = vlaneseq
    %v335 = vshrl.u32 %v334, 7
    %v336 = vsub.s32 %v114, %v335
    %v337 = vrot.slane %v269, %v336
    %v338 = vlaneseq
    %v339 = vshrl.u32 %v338, 7
    %v340 = vsub.s32 %v119, %v339
    %v341 = vrot.slane %v272, %v340
    %v342 = vsel %vm124, %v341, %v337
    %v343 = vlaneseq
    %v344 = vshrl.u32 %v343, 7
    %v345 = vsub.s32 %v114, %v344
    %v346 = vrot.slane %v275, %v345
    %v347 = vlaneseq
    %v348 = vshrl.u32 %v347, 7
    %v349 = vsub.s32 %v119, %v348
    %v350 = vrot.slane %v278, %v349
    %v351 = vsel %vm124, %v350, %v346
    %v352 = vlaneseq
    %v353 = vshrl.u32 %v352, 7
    %v354 = vsub.s32 %v114, %v353
    %v355 = vrot.slane %v281, %v354
    %v356 = vlaneseq
    %v357 = vshrl.u32 %v356, 7
    %v358 = vsub.s32 %v119, %v357
    %v359 = vrot.slane %v284, %v358
    %v360 = vsel %vm124, %v359, %v355
    %v361 = vlaneseq
    %v362 = vshrl.u32 %v361, 7
    %v363 = vsub.s32 %v114, %v362
    %v364 = vrot.slane %v287, %v363
    %v365 = vlaneseq
    %v366 = vshrl.u32 %v365, 7
    %v367 = vsub.s32 %v119, %v366
    %v368 = vrot.slane %v290, %v367
    %v369 = vsel %vm124, %v368, %v364
    %v370 = vlaneseq
    %v371 = vshrl.u32 %v370, 7
    %v372 = vsub.s32 %v114, %v371
    %v373 = vrot.slane %v293, %v372
    %v374 = vlaneseq
    %v375 = vshrl.u32 %v374, 7
    %v376 = vsub.s32 %v119, %v375
    %v377 = vrot.slane %v296, %v376
    %v378 = vsel %vm124, %v377, %v373
    %v379 = vlaneseq
    %v380 = vshrl.u32 %v379, 7
    %v381 = vsub.s32 %v114, %v380
    %v382 = vrot.slane %v299, %v381
    %v383 = vlaneseq
    %v384 = vshrl.u32 %v383, 7
    %v385 = vsub.s32 %v119, %v384
    %v386 = vrot.slane %v302, %v385
    %v387 = vsel %vm124, %v386, %v382
    %v388 = vlaneseq
    %v389 = vshrl.u32 %v388, 7
    %v390 = vsub.s32 %v114, %v389
    %v391 = vrot.slane %v305, %v390
    %v392 = vlaneseq
    %v393 = vshrl.u32 %v392, 7
    %v394 = vsub.s32 %v119, %v393
    %v395 = vrot.slane %v308, %v394
    %v396 = vsel %vm124, %v395, %v391
    %v397 = vsel %vm189, %v342, %v333
    %v398 = vsel %vm189, %v360, %v351
    %v399 = vsel %vm189, %v378, %v369
    %v400 = vsel %vm189, %v396, %v387
    %v405 = vsel %vm198, %v397, 0.0
    %406 = vadd.xlane.f32.xlu0 %v405
    %v407 = vpop.xlane.xlu0 %406
    %v408 = vsel %vm198, %v398, 0.0
    %409 = vadd.xlane.f32.xlu0 %v408
    %v410 = vpop.xlane.xlu0 %409
    %v411 = vsel %vm198, %v399, 0.0
    %412 = vadd.xlane.f32.xlu0 %v411
    %v413 = vpop.xlane.xlu0 %412
    %v414 = vsel %vm198, %v400, 0.0
    %415 = vadd.xlane.f32.xlu0 %v414
    %v416 = vpop.xlane.xlu0 %415
    %v417 = vmul.f32 %v407, 0.00390625
    %v418 = vmul.f32 %v410, 0.00390625
    %v419 = vmul.f32 %v413, 0.00390625
    %v420 = vmul.f32 %v416, 0.00390625
    %v425 = vlaneseq
    %v426 = vshrl.u32 %v425, 7
    %v427 = vsub.s32 %v114, %v426
    %v428 = vrot.slane %v417, %v427
    %v429 = vlaneseq
    %v430 = vshrl.u32 %v429, 7
    %v431 = vsub.s32 %v114, %v430
    %v432 = vrot.slane %v418, %v431
    %v433 = vlaneseq
    %v434 = vshrl.u32 %v433, 7
    %v435 = vsub.s32 %v114, %v434
    %v436 = vrot.slane %v419, %v435
    %v437 = vlaneseq
    %v438 = vshrl.u32 %v437, 7
    %v439 = vsub.s32 %v114, %v438
    %v440 = vrot.slane %v420, %v439
    %v441 = vsel %vm189, %v432, %v428
    %v442 = vsel %vm236, %v436, %v441
    %v443 = vsel %vm238, %v440, %v442
    %445 = vst.msk [vmem:[#allocation2 + $0x4] sm:$0xf] %vm241, %v443
    %v446 = vld [vmem:[#allocation3] sm:$0xff]
    %v447 = vld [vmem:[#allocation3 + $0x8] sm:$0x7f]
    %v448 = vld [vmem:[#allocation3 + $0x10] sm:$0xff]
    %v449 = vld [vmem:[#allocation3 + $0x18] sm:$0x7f]
    %v450 = vld [vmem:[#allocation3 + $0x20] sm:$0xff]
    %v451 = vld [vmem:[#allocation3 + $0x28] sm:$0x7f]
    %v452 = vld [vmem:[#allocation3 + $0x30] sm:$0xff]
    %v453 = vld [vmem:[#allocation3 + $0x38] sm:$0x7f]
    %v454 = vld [vmem:[#allocation3 + $0x40] sm:$0xff]
    %v455 = vld [vmem:[#allocation3 + $0x48] sm:$0x7f]
    %v456 = vld [vmem:[#allocation3 + $0x50] sm:$0xff]
    %v457 = vld [vmem:[#allocation3 + $0x58] sm:$0x7f]
    %v458 = vld [vmem:[#allocation3 + $0x60] sm:$0xff]
    %v459 = vld [vmem:[#allocation3 + $0x68] sm:$0x7f]
    %v460 = vld [vmem:[#allocation3 + $0x70] sm:$0xff]
    %v461 = vld [vmem:[#allocation3 + $0x78] sm:$0x7f]
    %478 = vrot.lane.b32.xlu0 %v446, 127
    %v479 = vpop.permute.xlu0 %478
    %480 = vrot.lane.b32.xlu0 %v447, 127
    %v481 = vpop.permute.xlu0 %480
    %482 = vrot.lane.b32.xlu0 %v448, 127
    %v483 = vpop.permute.xlu0 %482
    %484 = vrot.lane.b32.xlu0 %v449, 127
    %v485 = vpop.permute.xlu0 %484
    %486 = vrot.lane.b32.xlu0 %v450, 127
    %v487 = vpop.permute.xlu0 %486
    %488 = vrot.lane.b32.xlu0 %v451, 127
    %v489 = vpop.permute.xlu0 %488
    %490 = vrot.lane.b32.xlu0 %v452, 127
    %v491 = vpop.permute.xlu0 %490
    %492 = vrot.lane.b32.xlu0 %v453, 127
    %v493 = vpop.permute.xlu0 %492
    %494 = vrot.lane.b32.xlu0 %v454, 127
    %v495 = vpop.permute.xlu0 %494
    %496 = vrot.lane.b32.xlu0 %v455, 127
    %v497 = vpop.permute.xlu0 %496
    %498 = vrot.lane.b32.xlu0 %v456, 127
    %v499 = vpop.permute.xlu0 %498
    %500 = vrot.lane.b32.xlu0 %v457, 127
    %v501 = vpop.permute.xlu0 %500
    %502 = vrot.lane.b32.xlu0 %v458, 127
    %v503 = vpop.permute.xlu0 %502
    %504 = vrot.lane.b32.xlu0 %v459, 127
    %v505 = vpop.permute.xlu0 %504
    %506 = vrot.lane.b32.xlu0 %v460, 127
    %v507 = vpop.permute.xlu0 %506
    %508 = vrot.lane.b32.xlu0 %v461, 127
    %v509 = vpop.permute.xlu0 %508
    %v526 = vsel %vm47, %v479, 0.0
    %527 = vadd.xlane.f32.xlu0 %v526
    %v528 = vpop.xlane.xlu0 %527
    %v529 = vsel %vm51, %v481, 0.0
    %530 = vadd.xlane.f32.xlu0 %v529
    %v531 = vpop.xlane.xlu0 %530
    %v532 = vsel %vm47, %v483, 0.0
    %533 = vadd.xlane.f32.xlu0 %v532
    %v534 = vpop.xlane.xlu0 %533
    %v535 = vsel %vm51, %v485, 0.0
    %536 = vadd.xlane.f32.xlu0 %v535
    %v537 = vpop.xlane.xlu0 %536
    %v538 = vsel %vm47, %v487, 0.0
    %539 = vadd.xlane.f32.xlu0 %v538
    %v540 = vpop.xlane.xlu0 %539
    %v541 = vsel %vm51, %v489, 0.0
    %542 = vadd.xlane.f32.xlu0 %v541
    %v543 = vpop.xlane.xlu0 %542
    %v544 = vsel %vm47, %v491, 0.0
    %545 = vadd.xlane.f32.xlu0 %v544
    %v546 = vpop.xlane.xlu0 %545
    %v547 = vsel %vm51, %v493, 0.0
    %548 = vadd.xlane.f32.xlu0 %v547
    %v549 = vpop.xlane.xlu0 %548
    %v550 = vsel %vm47, %v495, 0.0
    %551 = vadd.xlane.f32.xlu0 %v550
    %v552 = vpop.xlane.xlu0 %551
    %v553 = vsel %vm51, %v497, 0.0
    %554 = vadd.xlane.f32.xlu0 %v553
    %v555 = vpop.xlane.xlu0 %554
    %v556 = vsel %vm47, %v499, 0.0
    %557 = vadd.xlane.f32.xlu0 %v556
    %v558 = vpop.xlane.xlu0 %557
    %v559 = vsel %vm51, %v501, 0.0
    %560 = vadd.xlane.f32.xlu0 %v559
    %v561 = vpop.xlane.xlu0 %560
    %v562 = vsel %vm47, %v503, 0.0
    %563 = vadd.xlane.f32.xlu0 %v562
    %v564 = vpop.xlane.xlu0 %563
    %v565 = vsel %vm51, %v505, 0.0
    %566 = vadd.xlane.f32.xlu0 %v565
    %v567 = vpop.xlane.xlu0 %566
    %v568 = vsel %vm47, %v507, 0.0
    %569 = vadd.xlane.f32.xlu0 %v568
    %v570 = vpop.xlane.xlu0 %569
    %v571 = vsel %vm51, %v509, 0.0
    %572 = vadd.xlane.f32.xlu0 %v571
    %v573 = vpop.xlane.xlu0 %572
    %v590 = vlaneseq
    %v591 = vshrl.u32 %v590, 7
    %v592 = vsub.s32 %v114, %v591
    %v593 = vrot.slane %v528, %v592
    %v594 = vlaneseq
    %v595 = vshrl.u32 %v594, 7
    %v596 = vsub.s32 %v119, %v595
    %v597 = vrot.slane %v531, %v596
    %v598 = vsel %vm124, %v597, %v593
    %v599 = vlaneseq
    %v600 = vshrl.u32 %v599, 7
    %v601 = vsub.s32 %v114, %v600
    %v602 = vrot.slane %v534, %v601
    %v603 = vlaneseq
    %v604 = vshrl.u32 %v603, 7
    %v605 = vsub.s32 %v119, %v604
    %v606 = vrot.slane %v537, %v605
    %v607 = vsel %vm124, %v606, %v602
    %v608 = vlaneseq
    %v609 = vshrl.u32 %v608, 7
    %v610 = vsub.s32 %v114, %v609
    %v611 = vrot.slane %v540, %v610
    %v612 = vlaneseq
    %v613 = vshrl.u32 %v612, 7
    %v614 = vsub.s32 %v119, %v613
    %v615 = vrot.slane %v543, %v614
    %v616 = vsel %vm124, %v615, %v611
    %v617 = vlaneseq
    %v618 = vshrl.u32 %v617, 7
    %v619 = vsub.s32 %v114, %v618
    %v620 = vrot.slane %v546, %v619
    %v621 = vlaneseq
    %v622 = vshrl.u32 %v621, 7
    %v623 = vsub.s32 %v119, %v622
    %v624 = vrot.slane %v549, %v623
    %v625 = vsel %vm124, %v624, %v620
    %v626 = vlaneseq
    %v627 = vshrl.u32 %v626, 7
    %v628 = vsub.s32 %v114, %v627
    %v629 = vrot.slane %v552, %v628
    %v630 = vlaneseq
    %v631 = vshrl.u32 %v630, 7
    %v632 = vsub.s32 %v119, %v631
    %v633 = vrot.slane %v555, %v632
    %v634 = vsel %vm124, %v633, %v629
    %v635 = vlaneseq
    %v636 = vshrl.u32 %v635, 7
    %v637 = vsub.s32 %v114, %v636
    %v638 = vrot.slane %v558, %v637
    %v639 = vlaneseq
    %v640 = vshrl.u32 %v639, 7
    %v641 = vsub.s32 %v119, %v640
    %v642 = vrot.slane %v561, %v641
    %v643 = vsel %vm124, %v642, %v638
    %v644 = vlaneseq
    %v645 = vshrl.u32 %v644, 7
    %v646 = vsub.s32 %v114, %v645
    %v647 = vrot.slane %v564, %v646
    %v648 = vlaneseq
    %v649 = vshrl.u32 %v648, 7
    %v650 = vsub.s32 %v119, %v649
    %v651 = vrot.slane %v567, %v650
    %v652 = vsel %vm124, %v651, %v647
    %v653 = vlaneseq
    %v654 = vshrl.u32 %v653, 7
    %v655 = vsub.s32 %v114, %v654
    %v656 = vrot.slane %v570, %v655
    %v657 = vlaneseq
    %v658 = vshrl.u32 %v657, 7
    %v659 = vsub.s32 %v119, %v658
    %v660 = vrot.slane %v573, %v659
    %v661 = vsel %vm124, %v660, %v656
    %v662 = vsel %vm189, %v607, %v598
    %v663 = vsel %vm189, %v625, %v616
    %v664 = vsel %vm189, %v643, %v634
    %v665 = vsel %vm189, %v661, %v652
    %v670 = vsel %vm198, %v662, 0.0
    %671 = vadd.xlane.f32.xlu0 %v670
    %v672 = vpop.xlane.xlu0 %671
    %v673 = vsel %vm198, %v663, 0.0
    %674 = vadd.xlane.f32.xlu0 %v673
    %v675 = vpop.xlane.xlu0 %674
    %v676 = vsel %vm198, %v664, 0.0
    %677 = vadd.xlane.f32.xlu0 %v676
    %v678 = vpop.xlane.xlu0 %677
    %v679 = vsel %vm198, %v665, 0.0
    %680 = vadd.xlane.f32.xlu0 %v679
    %v681 = vpop.xlane.xlu0 %680
    %v682 = vmul.f32 %v672, 0.00390625
    %v683 = vmul.f32 %v675, 0.00390625
    %v684 = vmul.f32 %v678, 0.00390625
    %v685 = vmul.f32 %v681, 0.00390625
    %v690 = vlaneseq
    %v691 = vshrl.u32 %v690, 7
    %v692 = vsub.s32 %v114, %v691
    %v693 = vrot.slane %v682, %v692
    %v694 = vlaneseq
    %v695 = vshrl.u32 %v694, 7
    %v696 = vsub.s32 %v114, %v695
    %v697 = vrot.slane %v683, %v696
    %v698 = vlaneseq
    %v699 = vshrl.u32 %v698, 7
    %v700 = vsub.s32 %v114, %v699
    %v701 = vrot.slane %v684, %v700
    %v702 = vlaneseq
    %v703 = vshrl.u32 %v702, 7
    %v704 = vsub.s32 %v114, %v703
    %v705 = vrot.slane %v685, %v704
    %v706 = vsel %vm189, %v697, %v693
    %v707 = vsel %vm236, %v701, %v706
    %v708 = vsel %vm238, %v705, %v707
    %710 = vst.msk [vmem:[#allocation2 + $0x8] sm:$0xf] %vm241, %v708
    %v711 = vld [vmem:[#allocation3] sm:$0xff]
    %v712 = vld [vmem:[#allocation3 + $0x8] sm:$0xff]
    %v713 = vld [vmem:[#allocation3 + $0x10] sm:$0xff]
    %v714 = vld [vmem:[#allocation3 + $0x18] sm:$0xff]
    %v715 = vld [vmem:[#allocation3 + $0x20] sm:$0xff]
    %v716 = vld [vmem:[#allocation3 + $0x28] sm:$0xff]
    %v717 = vld [vmem:[#allocation3 + $0x30] sm:$0xff]
    %v718 = vld [vmem:[#allocation3 + $0x38] sm:$0xff]
    %v719 = vld [vmem:[#allocation3 + $0x40] sm:$0xff]
    %v720 = vld [vmem:[#allocation3 + $0x48] sm:$0xff]
    %v721 = vld [vmem:[#allocation3 + $0x50] sm:$0xff]
    %v722 = vld [vmem:[#allocation3 + $0x58] sm:$0xff]
    %v723 = vld [vmem:[#allocation3 + $0x60] sm:$0xff]
    %v724 = vld [vmem:[#allocation3 + $0x68] sm:$0xff]
    %v725 = vld [vmem:[#allocation3 + $0x70] sm:$0xff]
    %v726 = vld [vmem:[#allocation3 + $0x78] sm:$0xff]
    %v727 = vsel %vm47, %v711, 0.0
    %728 = vadd.xlane.f32.xlu0 %v727
    %v729 = vpop.xlane.xlu0 %728
    %v730 = vsel %vm47, %v712, 0.0
    %731 = vadd.xlane.f32.xlu0 %v730
    %v732 = vpop.xlane.xlu0 %731
    %v733 = vsel %vm47, %v713, 0.0
    %734 = vadd.xlane.f32.xlu0 %v733
    %v735 = vpop.xlane.xlu0 %734
    %v736 = vsel %vm47, %v714, 0.0
    %737 = vadd.xlane.f32.xlu0 %v736
    %v738 = vpop.xlane.xlu0 %737
    %v739 = vsel %vm47, %v715, 0.0
    %740 = vadd.xlane.f32.xlu0 %v739
    %v741 = vpop.xlane.xlu0 %740
    %v742 = vsel %vm47, %v716, 0.0
    %743 = vadd.xlane.f32.xlu0 %v742
    %v744 = vpop.xlane.xlu0 %743
    %v745 = vsel %vm47, %v717, 0.0
    %746 = vadd.xlane.f32.xlu0 %v745
    %v747 = vpop.xlane.xlu0 %746
    %v748 = vsel %vm47, %v718, 0.0
    %749 = vadd.xlane.f32.xlu0 %v748
    %v750 = vpop.xlane.xlu0 %749
    %v751 = vsel %vm47, %v719, 0.0
    %752 = vadd.xlane.f32.xlu0 %v751
    %v753 = vpop.xlane.xlu0 %752
    %v754 = vsel %vm47, %v720, 0.0
    %755 = vadd.xlane.f32.xlu0 %v754
    %v756 = vpop.xlane.xlu0 %755
    %v757 = vsel %vm47, %v721, 0.0
    %758 = vadd.xlane.f32.xlu0 %v757
    %v759 = vpop.xlane.xlu0 %758
    %v760 = vsel %vm47, %v722, 0.0
    %761 = vadd.xlane.f32.xlu0 %v760
    %v762 = vpop.xlane.xlu0 %761
    %v763 = vsel %vm47, %v723, 0.0
    %764 = vadd.xlane.f32.xlu0 %v763
    %v765 = vpop.xlane.xlu0 %764
    %v766 = vsel %vm47, %v724, 0.0
    %767 = vadd.xlane.f32.xlu0 %v766
    %v768 = vpop.xlane.xlu0 %767
    %v769 = vsel %vm47, %v725, 0.0
    %770 = vadd.xlane.f32.xlu0 %v769
    %v771 = vpop.xlane.xlu0 %770
    %v772 = vsel %vm47, %v726, 0.0
    %773 = vadd.xlane.f32.xlu0 %v772
    %v774 = vpop.xlane.xlu0 %773
    %v791 = vlaneseq
    %v792 = vshrl.u32 %v791, 7
    %v793 = vsub.s32 %v114, %v792
    %v794 = vrot.slane %v729, %v793
    %v795 = vlaneseq
    %v796 = vshrl.u32 %v795, 7
    %v797 = vsub.s32 %v119, %v796
    %v798 = vrot.slane %v732, %v797
    %v799 = vsel %vm124, %v798, %v794
    %v800 = vlaneseq
    %v801 = vshrl.u32 %v800, 7
    %v802 = vsub.s32 %v114, %v801
    %v803 = vrot.slane %v735, %v802
    %v804 = vlaneseq
    %v805 = vshrl.u32 %v804, 7
    %v806 = vsub.s32 %v119, %v805
    %v807 = vrot.slane %v738, %v806
    %v808 = vsel %vm124, %v807, %v803
    %v809 = vlaneseq
    %v810 = vshrl.u32 %v809, 7
    %v811 = vsub.s32 %v114, %v810
    %v812 = vrot.slane %v741, %v811
    %v813 = vlaneseq
    %v814 = vshrl.u32 %v813, 7
    %v815 = vsub.s32 %v119, %v814
    %v816 = vrot.slane %v744, %v815
    %v817 = vsel %vm124, %v816, %v812
    %v818 = vlaneseq
    %v819 = vshrl.u32 %v818, 7
    %v820 = vsub.s32 %v114, %v819
    %v821 = vrot.slane %v747, %v820
    %v822 = vlaneseq
    %v823 = vshrl.u32 %v822, 7
    %v824 = vsub.s32 %v119, %v823
    %v825 = vrot.slane %v750, %v824
    %v826 = vsel %vm124, %v825, %v821
    %v827 = vlaneseq
    %v828 = vshrl.u32 %v827, 7
    %v829 = vsub.s32 %v114, %v828
    %v830 = vrot.slane %v753, %v829
    %v831 = vlaneseq
    %v832 = vshrl.u32 %v831, 7
    %v833 = vsub.s32 %v119, %v832
    %v834 = vrot.slane %v756, %v833
    %v835 = vsel %vm124, %v834, %v830
    %v836 = vlaneseq
    %v837 = vshrl.u32 %v836, 7
    %v838 = vsub.s32 %v114, %v837
    %v839 = vrot.slane %v759, %v838
    %v840 = vlaneseq
    %v841 = vshrl.u32 %v840, 7
    %v842 = vsub.s32 %v119, %v841
    %v843 = vrot.slane %v762, %v842
    %v844 = vsel %vm124, %v843, %v839
    %v845 = vlaneseq
    %v846 = vshrl.u32 %v845, 7
    %v847 = vsub.s32 %v114, %v846
    %v848 = vrot.slane %v765, %v847
    %v849 = vlaneseq
    %v850 = vshrl.u32 %v849, 7
    %v851 = vsub.s32 %v119, %v850
    %v852 = vrot.slane %v768, %v851
    %v853 = vsel %vm124, %v852, %v848
    %v854 = vlaneseq
    %v855 = vshrl.u32 %v854, 7
    %v856 = vsub.s32 %v114, %v855
    %v857 = vrot.slane %v771, %v856
    %v858 = vlaneseq
    %v859 = vshrl.u32 %v858, 7
    %v860 = vsub.s32 %v119, %v859
    %v861 = vrot.slane %v774, %v860
    %v862 = vsel %vm124, %v861, %v857
    %v863 = vsel %vm189, %v808, %v799
    %v864 = vsel %vm189, %v826, %v817
    %v865 = vsel %vm189, %v844, %v835
    %v866 = vsel %vm189, %v862, %v853
    %vm871 = vcmask 123904
    %v872 = vsel %vm871, %v863, 0.0
    %873 = vadd.xlane.f32.xlu0 %v872
    %v874 = vpop.xlane.xlu0 %873
    %v875 = vsel %vm871, %v864, 0.0
    %876 = vadd.xlane.f32.xlu0 %v875
    %v877 = vpop.xlane.xlu0 %876
    %v878 = vsel %vm871, %v865, 0.0
    %879 = vadd.xlane.f32.xlu0 %v878
    %v880 = vpop.xlane.xlu0 %879
    %v881 = vsel %vm871, %v866, 0.0
    %882 = vadd.xlane.f32.xlu0 %v881
    %v883 = vpop.xlane.xlu0 %882
    %v884 = vmul.f32 %v874, 0.00390625
    %v885 = vmul.f32 %v877, 0.00390625
    %v886 = vmul.f32 %v880, 0.00390625
    %v887 = vmul.f32 %v883, 0.00390625
    %v892 = vlaneseq
    %v893 = vshrl.u32 %v892, 7
    %v894 = vsub.s32 %v114, %v893
    %v895 = vrot.slane %v884, %v894
    %v896 = vlaneseq
    %v897 = vshrl.u32 %v896, 7
    %v898 = vsub.s32 %v114, %v897
    %v899 = vrot.slane %v885, %v898
    %v900 = vlaneseq
    %v901 = vshrl.u32 %v900, 7
    %v902 = vsub.s32 %v114, %v901
    %v903 = vrot.slane %v886, %v902
    %v904 = vlaneseq
    %v905 = vshrl.u32 %v904, 7
    %v906 = vsub.s32 %v114, %v905
    %v907 = vrot.slane %v887, %v906
    %v908 = vsel %vm189, %v899, %v895
    %v909 = vsel %vm236, %v903, %v908
    %v910 = vsel %vm238, %v907, %v909
    %912 = vst.msk [vmem:[#allocation2 + $0xc] sm:$0xf] %vm241, %v910
    %v913 = vld [vmem:[#allocation3] sm:$0xff]
    %v914 = vld [vmem:[#allocation3 + $0x8] sm:$0xff]
    %v915 = vld [vmem:[#allocation3 + $0x10] sm:$0xff]
    %v916 = vld [vmem:[#allocation3 + $0x18] sm:$0xff]
    %v917 = vld [vmem:[#allocation3 + $0x20] sm:$0xff]
    %v918 = vld [vmem:[#allocation3 + $0x28] sm:$0xff]
    %v919 = vld [vmem:[#allocation3 + $0x30] sm:$0xff]
    %v920 = vld [vmem:[#allocation3 + $0x38] sm:$0xff]
    %v921 = vld [vmem:[#allocation3 + $0x40] sm:$0xff]
    %v922 = vld [vmem:[#allocation3 + $0x48] sm:$0xff]
    %v923 = vld [vmem:[#allocation3 + $0x50] sm:$0xff]
    %v924 = vld [vmem:[#allocation3 + $0x58] sm:$0xff]
    %v925 = vld [vmem:[#allocation3 + $0x60] sm:$0xff]
    %v926 = vld [vmem:[#allocation3 + $0x68] sm:$0xff]
    %v927 = vld [vmem:[#allocation3 + $0x70] sm:$0xff]
    %v928 = vld [vmem:[#allocation3 + $0x78] sm:$0xff]
    %v929 = vsel %vm259, %v913, 0.0
    %930 = vadd.xlane.f32.xlu0 %v929
    %v931 = vpop.xlane.xlu0 %930
    %v932 = vsel %vm259, %v914, 0.0
    %933 = vadd.xlane.f32.xlu0 %v932
    %v934 = vpop.xlane.xlu0 %933
    %v935 = vsel %vm259, %v915, 0.0
    %936 = vadd.xlane.f32.xlu0 %v935
    %v937 = vpop.xlane.xlu0 %936
    %v938 = vsel %vm259, %v916, 0.0
    %939 = vadd.xlane.f32.xlu0 %v938
    %v940 = vpop.xlane.xlu0 %939
    %v941 = vsel %vm259, %v917, 0.0
    %942 = vadd.xlane.f32.xlu0 %v941
    %v943 = vpop.xlane.xlu0 %942
    %v944 = vsel %vm259, %v918, 0.0
    %945 = vadd.xlane.f32.xlu0 %v944
    %v946 = vpop.xlane.xlu0 %945
    %v947 = vsel %vm259, %v919, 0.0
    %948 = vadd.xlane.f32.xlu0 %v947
    %v949 = vpop.xlane.xlu0 %948
    %v950 = vsel %vm259, %v920, 0.0
    %951 = vadd.xlane.f32.xlu0 %v950
    %v952 = vpop.xlane.xlu0 %951
    %v953 = vsel %vm259, %v921, 0.0
    %954 = vadd.xlane.f32.xlu0 %v953
    %v955 = vpop.xlane.xlu0 %954
    %v956 = vsel %vm259, %v922, 0.0
    %957 = vadd.xlane.f32.xlu0 %v956
    %v958 = vpop.xlane.xlu0 %957
    %v959 = vsel %vm259, %v923, 0.0
    %960 = vadd.xlane.f32.xlu0 %v959
    %v961 = vpop.xlane.xlu0 %960
    %v962 = vsel %vm259, %v924, 0.0
    %963 = vadd.xlane.f32.xlu0 %v962
    %v964 = vpop.xlane.xlu0 %963
    %v965 = vsel %vm259, %v925, 0.0
    %966 = vadd.xlane.f32.xlu0 %v965
    %v967 = vpop.xlane.xlu0 %966
    %v968 = vsel %vm259, %v926, 0.0
    %969 = vadd.xlane.f32.xlu0 %v968
    %v970 = vpop.xlane.xlu0 %969
    %v971 = vsel %vm259, %v927, 0.0
    %972 = vadd.xlane.f32.xlu0 %v971
    %v973 = vpop.xlane.xlu0 %972
    %v974 = vsel %vm259, %v928, 0.0
    %975 = vadd.xlane.f32.xlu0 %v974
    %v976 = vpop.xlane.xlu0 %975
    %v993 = vlaneseq
    %v994 = vshrl.u32 %v993, 7
    %v995 = vsub.s32 %v114, %v994
    %v996 = vrot.slane %v931, %v995
    %v997 = vlaneseq
    %v998 = vshrl.u32 %v997, 7
    %v999 = vsub.s32 %v119, %v998
    %v1000 = vrot.slane %v934, %v999
    %v1001 = vsel %vm124, %v1000, %v996
    %v1002 = vlaneseq
    %v1003 = vshrl.u32 %v1002, 7
    %v1004 = vsub.s32 %v114, %v1003
    %v1005 = vrot.slane %v937, %v1004
    %v1006 = vlaneseq
    %v1007 = vshrl.u32 %v1006, 7
    %v1008 = vsub.s32 %v119, %v1007
    %v1009 = vrot.slane %v940, %v1008
    %v1010 = vsel %vm124, %v1009, %v1005
    %v1011 = vlaneseq
    %v1012 = vshrl.u32 %v1011, 7
    %v1013 = vsub.s32 %v114, %v1012
    %v1014 = vrot.slane %v943, %v1013
    %v1015 = vlaneseq
    %v1016 = vshrl.u32 %v1015, 7
    %v1017 = vsub.s32 %v119, %v1016
    %v1018 = vrot.slane %v946, %v1017
    %v1019 = vsel %vm124, %v1018, %v1014
    %v1020 = vlaneseq
    %v1021 = vshrl.u32 %v1020, 7
    %v1022 = vsub.s32 %v114, %v1021
    %v1023 = vrot.slane %v949, %v1022
    %v1024 = vlaneseq
    %v1025 = vshrl.u32 %v1024, 7
    %v1026 = vsub.s32 %v119, %v1025
    %v1027 = vrot.slane %v952, %v1026
    %v1028 = vsel %vm124, %v1027, %v1023
    %v1029 = vlaneseq
    %v1030 = vshrl.u32 %v1029, 7
    %v1031 = vsub.s32 %v114, %v1030
    %v1032 = vrot.slane %v955, %v1031
    %v1033 = vlaneseq
    %v1034 = vshrl.u32 %v1033, 7
    %v1035 = vsub.s32 %v119, %v1034
    %v1036 = vrot.slane %v958, %v1035
    %v1037 = vsel %vm124, %v1036, %v1032
    %v1038 = vlaneseq
    %v1039 = vshrl.u32 %v1038, 7
    %v1040 = vsub.s32 %v114, %v1039
    %v1041 = vrot.slane %v961, %v1040
    %v1042 = vlaneseq
    %v1043 = vshrl.u32 %v1042, 7
    %v1044 = vsub.s32 %v119, %v1043
    %v1045 = vrot.slane %v964, %v1044
    %v1046 = vsel %vm124, %v1045, %v1041
    %v1047 = vlaneseq
    %v1048 = vshrl.u32 %v1047, 7
    %v1049 = vsub.s32 %v114, %v1048
    %v1050 = vrot.slane %v967, %v1049
    %v1051 = vlaneseq
    %v1052 = vshrl.u32 %v1051, 7
    %v1053 = vsub.s32 %v119, %v1052
    %v1054 = vrot.slane %v970, %v1053
    %v1055 = vsel %vm124, %v1054, %v1050
    %v1056 = vlaneseq
    %v1057 = vshrl.u32 %v1056, 7
    %v1058 = vsub.s32 %v114, %v1057
    %v1059 = vrot.slane %v973, %v1058
    %v1060 = vlaneseq
    %v1061 = vshrl.u32 %v1060, 7
    %v1062 = vsub.s32 %v119, %v1061
    %v1063 = vrot.slane %v976, %v1062
    %v1064 = vsel %vm124, %v1063, %v1059
    %v1065 = vsel %vm189, %v1010, %v1001
    %v1066 = vsel %vm189, %v1028, %v1019
    %v1067 = vsel %vm189, %v1046, %v1037
    %v1068 = vsel %vm189, %v1064, %v1055
    %v1073 = vsel %vm871, %v1065, 0.0
    %1074 = vadd.xlane.f32.xlu0 %v1073
    %v1075 = vpop.xlane.xlu0 %1074
    %v1076 = vsel %vm871, %v1066, 0.0
    %1077 = vadd.xlane.f32.xlu0 %v1076
    %v1078 = vpop.xlane.xlu0 %1077
    %v1079 = vsel %vm871, %v1067, 0.0
    %1080 = vadd.xlane.f32.xlu0 %v1079
    %v1081 = vpop.xlane.xlu0 %1080
    %v1082 = vsel %vm871, %v1068, 0.0
    %1083 = vadd.xlane.f32.xlu0 %v1082
    %v1084 = vpop.xlane.xlu0 %1083
    %v1085 = vmul.f32 %v1075, 0.00390625
    %v1086 = vmul.f32 %v1078, 0.00390625
    %v1087 = vmul.f32 %v1081, 0.00390625
    %v1088 = vmul.f32 %v1084, 0.00390625
    %v1093 = vlaneseq
    %v1094 = vshrl.u32 %v1093, 7
    %v1095 = vsub.s32 %v114, %v1094
    %v1096 = vrot.slane %v1085, %v1095
    %v1097 = vlaneseq
    %v1098 = vshrl.u32 %v1097, 7
    %v1099 = vsub.s32 %v114, %v1098
    %v1100 = vrot.slane %v1086, %v1099
    %v1101 = vlaneseq
    %v1102 = vshrl.u32 %v1101, 7
    %v1103 = vsub.s32 %v114, %v1102
    %v1104 = vrot.slane %v1087, %v1103
    %v1105 = vlaneseq
    %v1106 = vshrl.u32 %v1105, 7
    %v1107 = vsub.s32 %v114, %v1106
    %v1108 = vrot.slane %v1088, %v1107
    %v1109 = vsel %vm189, %v1100, %v1096
    %v1110 = vsel %vm236, %v1104, %v1109
    %v1111 = vsel %vm238, %v1108, %v1110
    %1113 = vst.msk [vmem:[#allocation2 + $0x10] sm:$0xf] %vm241, %v1111
    %v1114 = vld [vmem:[#allocation3] sm:$0xff]
    %v1115 = vld [vmem:[#allocation3 + $0x8] sm:$0xff]
    %v1116 = vld [vmem:[#allocation3 + $0x10] sm:$0xff]
    %v1117 = vld [vmem:[#allocation3 + $0x18] sm:$0xff]
    %v1118 = vld [vmem:[#allocation3 + $0x20] sm:$0xff]
    %v1119 = vld [vmem:[#allocation3 + $0x28] sm:$0xff]
    %v1120 = vld [vmem:[#allocation3 + $0x30] sm:$0xff]
    %v1121 = vld [vmem:[#allocation3 + $0x38] sm:$0xff]
    %v1122 = vld [vmem:[#allocation3 + $0x40] sm:$0xff]
    %v1123 = vld [vmem:[#allocation3 + $0x48] sm:$0xff]
    %v1124 = vld [vmem:[#allocation3 + $0x50] sm:$0xff]
    %v1125 = vld [vmem:[#allocation3 + $0x58] sm:$0xff]
    %v1126 = vld [vmem:[#allocation3 + $0x60] sm:$0xff]
    %v1127 = vld [vmem:[#allocation3 + $0x68] sm:$0xff]
    %v1128 = vld [vmem:[#allocation3 + $0x70] sm:$0xff]
    %v1129 = vld [vmem:[#allocation3 + $0x78] sm:$0xff]
    %1146 = vrot.lane.b32.xlu0 %v1114, 127
    %v1147 = vpop.permute.xlu0 %1146
    %1148 = vrot.lane.b32.xlu0 %v1115, 127
    %v1149 = vpop.permute.xlu0 %1148
    %1150 = vrot.lane.b32.xlu0 %v1116, 127
    %v1151 = vpop.permute.xlu0 %1150
    %1152 = vrot.lane.b32.xlu0 %v1117, 127
    %v1153 = vpop.permute.xlu0 %1152
    %1154 = vrot.lane.b32.xlu0 %v1118, 127
    %v1155 = vpop.permute.xlu0 %1154
    %1156 = vrot.lane.b32.xlu0 %v1119, 127
    %v1157 = vpop.permute.xlu0 %1156
    %1158 = vrot.lane.b32.xlu0 %v1120, 127
    %v1159 = vpop.permute.xlu0 %1158
    %1160 = vrot.lane.b32.xlu0 %v1121, 127
    %v1161 = vpop.permute.xlu0 %1160
    %1162 = vrot.lane.b32.xlu0 %v1122, 127
    %v1163 = vpop.permute.xlu0 %1162
    %1164 = vrot.lane.b32.xlu0 %v1123, 127
    %v1165 = vpop.permute.xlu0 %1164
    %1166 = vrot.lane.b32.xlu0 %v1124, 127
    %v1167 = vpop.permute.xlu0 %1166
    %1168 = vrot.lane.b32.xlu0 %v1125, 127
    %v1169 = vpop.permute.xlu0 %1168
    %1170 = vrot.lane.b32.xlu0 %v1126, 127
    %v1171 = vpop.permute.xlu0 %1170
    %1172 = vrot.lane.b32.xlu0 %v1127, 127
    %v1173 = vpop.permute.xlu0 %1172
    %1174 = vrot.lane.b32.xlu0 %v1128, 127
    %v1175 = vpop.permute.xlu0 %1174
    %1176 = vrot.lane.b32.xlu0 %v1129, 127
    %v1177 = vpop.permute.xlu0 %1176
    %v1194 = vsel %vm47, %v1147, 0.0
    %1195 = vadd.xlane.f32.xlu0 %v1194
    %v1196 = vpop.xlane.xlu0 %1195
    %v1197 = vsel %vm47, %v1149, 0.0
    %1198 = vadd.xlane.f32.xlu0 %v1197
    %v1199 = vpop.xlane.xlu0 %1198
    %v1200 = vsel %vm47, %v1151, 0.0
    %1201 = vadd.xlane.f32.xlu0 %v1200
    %v1202 = vpop.xlane.xlu0 %1201
    %v1203 = vsel %vm47, %v1153, 0.0
    %1204 = vadd.xlane.f32.xlu0 %v1203
    %v1205 = vpop.xlane.xlu0 %1204
    %v1206 = vsel %vm47, %v1155, 0.0
    %1207 = vadd.xlane.f32.xlu0 %v1206
    %v1208 = vpop.xlane.xlu0 %1207
    %v1209 = vsel %vm47, %v1157, 0.0
    %1210 = vadd.xlane.f32.xlu0 %v1209
    %v1211 = vpop.xlane.xlu0 %1210
    %v1212 = vsel %vm47, %v1159, 0.0
    %1213 = vadd.xlane.f32.xlu0 %v1212
    %v1214 = vpop.xlane.xlu0 %1213
    %v1215 = vsel %vm47, %v1161, 0.0
    %1216 = vadd.xlane.f32.xlu0 %v1215
    %v1217 = vpop.xlane.xlu0 %1216
    %v1218 = vsel %vm47, %v1163, 0.0
    %1219 = vadd.xlane.f32.xlu0 %v1218
    %v1220 = vpop.xlane.xlu0 %1219
    %v1221 = vsel %vm47, %v1165, 0.0
    %1222 = vadd.xlane.f32.xlu0 %v1221
    %v1223 = vpop.xlane.xlu0 %1222
    %v1224 = vsel %vm47, %v1167, 0.0
    %1225 = vadd.xlane.f32.xlu0 %v1224
    %v1226 = vpop.xlane.xlu0 %1225
    %v1227 = vsel %vm47, %v1169, 0.0
    %1228 = vadd.xlane.f32.xlu0 %v1227
    %v1229 = vpop.xlane.xlu0 %1228
    %v1230 = vsel %vm47, %v1171, 0.0
    %1231 = vadd.xlane.f32.xlu0 %v1230
    %v1232 = vpop.xlane.xlu0 %1231
    %v1233 = vsel %vm47, %v1173, 0.0
    %1234 = vadd.xlane.f32.xlu0 %v1233
    %v1235 = vpop.xlane.xlu0 %1234
    %v1236 = vsel %vm47, %v1175, 0.0
    %1237 = vadd.xlane.f32.xlu0 %v1236
    %v1238 = vpop.xlane.xlu0 %1237
    %v1239 = vsel %vm47, %v1177, 0.0
    %1240 = vadd.xlane.f32.xlu0 %v1239
    %v1241 = vpop.xlane.xlu0 %1240
    %v1258 = vlaneseq
    %v1259 = vshrl.u32 %v1258, 7
    %v1260 = vsub.s32 %v114, %v1259
    %v1261 = vrot.slane %v1196, %v1260
    %v1262 = vlaneseq
    %v1263 = vshrl.u32 %v1262, 7
    %v1264 = vsub.s32 %v119, %v1263
    %v1265 = vrot.slane %v1199, %v1264
    %v1266 = vsel %vm124, %v1265, %v1261
    %v1267 = vlaneseq
    %v1268 = vshrl.u32 %v1267, 7
    %v1269 = vsub.s32 %v114, %v1268
    %v1270 = vrot.slane %v1202, %v1269
    %v1271 = vlaneseq
    %v1272 = vshrl.u32 %v1271, 7
    %v1273 = vsub.s32 %v119, %v1272
    %v1274 = vrot.slane %v1205, %v1273
    %v1275 = vsel %vm124, %v1274, %v1270
    %v1276 = vlaneseq
    %v1277 = vshrl.u32 %v1276, 7
    %v1278 = vsub.s32 %v114, %v1277
    %v1279 = vrot.slane %v1208, %v1278
    %v1280 = vlaneseq
    %v1281 = vshrl.u32 %v1280, 7
    %v1282 = vsub.s32 %v119, %v1281
    %v1283 = vrot.slane %v1211, %v1282
    %v1284 = vsel %vm124, %v1283, %v1279
    %v1285 = vlaneseq
    %v1286 = vshrl.u32 %v1285, 7
    %v1287 = vsub.s32 %v114, %v1286
    %v1288 = vrot.slane %v1214, %v1287
    %v1289 = vlaneseq
    %v1290 = vshrl.u32 %v1289, 7
    %v1291 = vsub.s32 %v119, %v1290
    %v1292 = vrot.slane %v1217, %v1291
    %v1293 = vsel %vm124, %v1292, %v1288
    %v1294 = vlaneseq
    %v1295 = vshrl.u32 %v1294, 7
    %v1296 = vsub.s32 %v114, %v1295
    %v1297 = vrot.slane %v1220, %v1296
    %v1298 = vlaneseq
    %v1299 = vshrl.u32 %v1298, 7
    %v1300 = vsub.s32 %v119, %v1299
    %v1301 = vrot.slane %v1223, %v1300
    %v1302 = vsel %vm124, %v1301, %v1297
    %v1303 = vlaneseq
    %v1304 = vshrl.u32 %v1303, 7
    %v1305 = vsub.s32 %v114, %v1304
    %v1306 = vrot.slane %v1226, %v1305
    %v1307 = vlaneseq
    %v1308 = vshrl.u32 %v1307, 7
    %v1309 = vsub.s32 %v119, %v1308
    %v1310 = vrot.slane %v1229, %v1309
    %v1311 = vsel %vm124, %v1310, %v1306
    %v1312 = vlaneseq
    %v1313 = vshrl.u32 %v1312, 7
    %v1314 = vsub.s32 %v114, %v1313
    %v1315 = vrot.slane %v1232, %v1314
    %v1316 = vlaneseq
    %v1317 = vshrl.u32 %v1316, 7
    %v1318 = vsub.s32 %v119, %v1317
    %v1319 = vrot.slane %v1235, %v1318
    %v1320 = vsel %vm124, %v1319, %v1315
    %v1321 = vlaneseq
    %v1322 = vshrl.u32 %v1321, 7
    %v1323 = vsub.s32 %v114, %v1322
    %v1324 = vrot.slane %v1238, %v1323
    %v1325 = vlaneseq
    %v1326 = vshrl.u32 %v1325, 7
    %v1327 = vsub.s32 %v119, %v1326
    %v1328 = vrot.slane %v1241, %v1327
    %v1329 = vsel %vm124, %v1328, %v1324
    %v1330 = vsel %vm189, %v1275, %v1266
    %v1331 = vsel %vm189, %v1293, %v1284
    %v1332 = vsel %vm189, %v1311, %v1302
    %v1333 = vsel %vm189, %v1329, %v1320
    %v1338 = vsel %vm871, %v1330, 0.0
    %1339 = vadd.xlane.f32.xlu0 %v1338
    %v1340 = vpop.xlane.xlu0 %1339
    %v1341 = vsel %vm871, %v1331, 0.0
    %1342 = vadd.xlane.f32.xlu0 %v1341
    %v1343 = vpop.xlane.xlu0 %1342
    %v1344 = vsel %vm871, %v1332, 0.0
    %1345 = vadd.xlane.f32.xlu0 %v1344
    %v1346 = vpop.xlane.xlu0 %1345
    %v1347 = vsel %vm871, %v1333, 0.0
    %1348 = vadd.xlane.f32.xlu0 %v1347
    %v1349 = vpop.xlane.xlu0 %1348
    %v1350 = vmul.f32 %v1340, 0.00390625
    %v1351 = vmul.f32 %v1343, 0.00390625
    %v1352 = vmul.f32 %v1346, 0.00390625
    %v1353 = vmul.f32 %v1349, 0.00390625
    %v1358 = vlaneseq
    %v1359 = vshrl.u32 %v1358, 7
    %v1360 = vsub.s32 %v114, %v1359
    %v1361 = vrot.slane %v1350, %v1360
    %v1362 = vlaneseq
    %v1363 = vshrl.u32 %v1362, 7
    %v1364 = vsub.s32 %v114, %v1363
    %v1365 = vrot.slane %v1351, %v1364
    %v1366 = vlaneseq
    %v1367 = vshrl.u32 %v1366, 7
    %v1368 = vsub.s32 %v114, %v1367
    %v1369 = vrot.slane %v1352, %v1368
    %v1370 = vlaneseq
    %v1371 = vshrl.u32 %v1370, 7
    %v1372 = vsub.s32 %v114, %v1371
    %v1373 = vrot.slane %v1353, %v1372
    %v1374 = vsel %vm189, %v1365, %v1361
    %v1375 = vsel %vm236, %v1369, %v1374
    %v1376 = vsel %vm238, %v1373, %v1375
    %1378 = vst.msk [vmem:[#allocation2 + $0x14] sm:$0xf] %vm241, %v1376
    %v1379 = vld [vmem:[#allocation3 + $0x1] sm:$0xff]
    %v1380 = vld [vmem:[#allocation3 + $0x9] sm:$0x7f]
    %v1381 = vld [vmem:[#allocation3 + $0x11] sm:$0xff]
    %v1382 = vld [vmem:[#allocation3 + $0x19] sm:$0x7f]
    %v1383 = vld [vmem:[#allocation3 + $0x21] sm:$0xff]
    %v1384 = vld [vmem:[#allocation3 + $0x29] sm:$0x7f]
    %v1385 = vld [vmem:[#allocation3 + $0x31] sm:$0xff]
    %v1386 = vld [vmem:[#allocation3 + $0x39] sm:$0x7f]
    %v1387 = vld [vmem:[#allocation3 + $0x41] sm:$0xff]
    %v1388 = vld [vmem:[#allocation3 + $0x49] sm:$0x7f]
    %v1389 = vld [vmem:[#allocation3 + $0x51] sm:$0xff]
    %v1390 = vld [vmem:[#allocation3 + $0x59] sm:$0x7f]
    %v1391 = vld [vmem:[#allocation3 + $0x61] sm:$0xff]
    %v1392 = vld [vmem:[#allocation3 + $0x69] sm:$0x7f]
    %v1393 = vld [vmem:[#allocation3 + $0x71] sm:$0xff]
    %v1394 = vld [vmem:[#allocation3 + $0x79] sm:$0x7f]
    %v1395 = vsel %vm47, %v1379, 0.0
    %1396 = vadd.xlane.f32.xlu0 %v1395
    %v1397 = vpop.xlane.xlu0 %1396
    %v1398 = vsel %vm51, %v1380, 0.0
    %1399 = vadd.xlane.f32.xlu0 %v1398
    %v1400 = vpop.xlane.xlu0 %1399
    %v1401 = vsel %vm47, %v1381, 0.0
    %1402 = vadd.xlane.f32.xlu0 %v1401
    %v1403 = vpop.xlane.xlu0 %1402
    %v1404 = vsel %vm51, %v1382, 0.0
    %1405 = vadd.xlane.f32.xlu0 %v1404
    %v1406 = vpop.xlane.xlu0 %1405
    %v1407 = vsel %vm47, %v1383, 0.0
    %1408 = vadd.xlane.f32.xlu0 %v1407
    %v1409 = vpop.xlane.xlu0 %1408
    %v1410 = vsel %vm51, %v1384, 0.0
    %1411 = vadd.xlane.f32.xlu0 %v1410
    %v1412 = vpop.xlane.xlu0 %1411
    %v1413 = vsel %vm47, %v1385, 0.0
    %1414 = vadd.xlane.f32.xlu0 %v1413
    %v1415 = vpop.xlane.xlu0 %1414
    %v1416 = vsel %vm51, %v1386, 0.0
    %1417 = vadd.xlane.f32.xlu0 %v1416
    %v1418 = vpop.xlane.xlu0 %1417
    %v1419 = vsel %vm47, %v1387, 0.0
    %1420 = vadd.xlane.f32.xlu0 %v1419
    %v1421 = vpop.xlane.xlu0 %1420
    %v1422 = vsel %vm51, %v1388, 0.0
    %1423 = vadd.xlane.f32.xlu0 %v1422
    %v1424 = vpop.xlane.xlu0 %1423
    %v1425 = vsel %vm47, %v1389, 0.0
    %1426 = vadd.xlane.f32.xlu0 %v1425
    %v1427 = vpop.xlane.xlu0 %1426
    %v1428 = vsel %vm51, %v1390, 0.0
    %1429 = vadd.xlane.f32.xlu0 %v1428
    %v1430 = vpop.xlane.xlu0 %1429
    %v1431 = vsel %vm47, %v1391, 0.0
    %1432 = vadd.xlane.f32.xlu0 %v1431
    %v1433 = vpop.xlane.xlu0 %1432
    %v1434 = vsel %vm51, %v1392, 0.0
    %1435 = vadd.xlane.f32.xlu0 %v1434
    %v1436 = vpop.xlane.xlu0 %1435
    %v1437 = vsel %vm47, %v1393, 0.0
    %1438 = vadd.xlane.f32.xlu0 %v1437
    %v1439 = vpop.xlane.xlu0 %1438
    %v1440 = vsel %vm51, %v1394, 0.0
    %1441 = vadd.xlane.f32.xlu0 %v1440
    %v1442 = vpop.xlane.xlu0 %1441
    %v1459 = vlaneseq
    %v1460 = vshrl.u32 %v1459, 7
    %v1461 = vsub.s32 %v114, %v1460
    %v1462 = vrot.slane %v1397, %v1461
    %v1463 = vlaneseq
    %v1464 = vshrl.u32 %v1463, 7
    %v1465 = vsub.s32 %v119, %v1464
    %v1466 = vrot.slane %v1400, %v1465
    %v1467 = vsel %vm124, %v1466, %v1462
    %v1468 = vlaneseq
    %v1469 = vshrl.u32 %v1468, 7
    %v1470 = vsub.s32 %v114, %v1469
    %v1471 = vrot.slane %v1403, %v1470
    %v1472 = vlaneseq
    %v1473 = vshrl.u32 %v1472, 7
    %v1474 = vsub.s32 %v119, %v1473
    %v1475 = vrot.slane %v1406, %v1474
    %v1476 = vsel %vm124, %v1475, %v1471
    %v1477 = vlaneseq
    %v1478 = vshrl.u32 %v1477, 7
    %v1479 = vsub.s32 %v114, %v1478
    %v1480 = vrot.slane %v1409, %v1479
    %v1481 = vlaneseq
    %v1482 = vshrl.u32 %v1481, 7
    %v1483 = vsub.s32 %v119, %v1482
    %v1484 = vrot.slane %v1412, %v1483
    %v1485 = vsel %vm124, %v1484, %v1480
    %v1486 = vlaneseq
    %v1487 = vshrl.u32 %v1486, 7
    %v1488 = vsub.s32 %v114, %v1487
    %v1489 = vrot.slane %v1415, %v1488
    %v1490 = vlaneseq
    %v1491 = vshrl.u32 %v1490, 7
    %v1492 = vsub.s32 %v119, %v1491
    %v1493 = vrot.slane %v1418, %v1492
    %v1494 = vsel %vm124, %v1493, %v1489
    %v1495 = vlaneseq
    %v1496 = vshrl.u32 %v1495, 7
    %v1497 = vsub.s32 %v114, %v1496
    %v1498 = vrot.slane %v1421, %v1497
    %v1499 = vlaneseq
    %v1500 = vshrl.u32 %v1499, 7
    %v1501 = vsub.s32 %v119, %v1500
    %v1502 = vrot.slane %v1424, %v1501
    %v1503 = vsel %vm124, %v1502, %v1498
    %v1504 = vlaneseq
    %v1505 = vshrl.u32 %v1504, 7
    %v1506 = vsub.s32 %v114, %v1505
    %v1507 = vrot.slane %v1427, %v1506
    %v1508 = vlaneseq
    %v1509 = vshrl.u32 %v1508, 7
    %v1510 = vsub.s32 %v119, %v1509
    %v1511 = vrot.slane %v1430, %v1510
    %v1512 = vsel %vm124, %v1511, %v1507
    %v1513 = vlaneseq
    %v1514 = vshrl.u32 %v1513, 7
    %v1515 = vsub.s32 %v114, %v1514
    %v1516 = vrot.slane %v1433, %v1515
    %v1517 = vlaneseq
    %v1518 = vshrl.u32 %v1517, 7
    %v1519 = vsub.s32 %v119, %v1518
    %v1520 = vrot.slane %v1436, %v1519
    %v1521 = vsel %vm124, %v1520, %v1516
    %v1522 = vlaneseq
    %v1523 = vshrl.u32 %v1522, 7
    %v1524 = vsub.s32 %v114, %v1523
    %v1525 = vrot.slane %v1439, %v1524
    %v1526 = vlaneseq
    %v1527 = vshrl.u32 %v1526, 7
    %v1528 = vsub.s32 %v119, %v1527
    %v1529 = vrot.slane %v1442, %v1528
    %v1530 = vsel %vm124, %v1529, %v1525
    %v1531 = vsel %vm189, %v1476, %v1467
    %v1532 = vsel %vm189, %v1494, %v1485
    %v1533 = vsel %vm189, %v1512, %v1503
    %v1534 = vsel %vm189, %v1530, %v1521
    %v1539 = vsel %vm198, %v1531, 0.0
    %1540 = vadd.xlane.f32.xlu0 %v1539
    %v1541 = vpop.xlane.xlu0 %1540
    %v1542 = vsel %vm198, %v1532, 0.0
    %1543 = vadd.xlane.f32.xlu0 %v1542
    %v1544 = vpop.xlane.xlu0 %1543
    %v1545 = vsel %vm198, %v1533, 0.0
    %1546 = vadd.xlane.f32.xlu0 %v1545
    %v1547 = vpop.xlane.xlu0 %1546
    %v1548 = vsel %vm198, %v1534, 0.0
    %1549 = vadd.xlane.f32.xlu0 %v1548
    %v1550 = vpop.xlane.xlu0 %1549
    %v1551 = vmul.f32 %v1541, 0.00390625
    %v1552 = vmul.f32 %v1544, 0.00390625
    %v1553 = vmul.f32 %v1547, 0.00390625
    %v1554 = vmul.f32 %v1550, 0.00390625
    %v1559 = vlaneseq
    %v1560 = vshrl.u32 %v1559, 7
    %v1561 = vsub.s32 %v114, %v1560
    %v1562 = vrot.slane %v1551, %v1561
    %v1563 = vlaneseq
    %v1564 = vshrl.u32 %v1563, 7
    %v1565 = vsub.s32 %v114, %v1564
    %v1566 = vrot.slane %v1552, %v1565
    %v1567 = vlaneseq
    %v1568 = vshrl.u32 %v1567, 7
    %v1569 = vsub.s32 %v114, %v1568
    %v1570 = vrot.slane %v1553, %v1569
    %v1571 = vlaneseq
    %v1572 = vshrl.u32 %v1571, 7
    %v1573 = vsub.s32 %v114, %v1572
    %v1574 = vrot.slane %v1554, %v1573
    %v1575 = vsel %vm189, %v1566, %v1562
    %v1576 = vsel %vm236, %v1570, %v1575
    %v1577 = vsel %vm238, %v1574, %v1576
    %1579 = vst.msk [vmem:[#allocation2 + $0x18] sm:$0xf] %vm241, %v1577
    %v1580 = vld [vmem:[#allocation3 + $0x1] sm:$0xff]
    %v1581 = vld [vmem:[#allocation3 + $0x9] sm:$0x7f]
    %v1582 = vld [vmem:[#allocation3 + $0x11] sm:$0xff]
    %v1583 = vld [vmem:[#allocation3 + $0x19] sm:$0x7f]
    %v1584 = vld [vmem:[#allocation3 + $0x21] sm:$0xff]
    %v1585 = vld [vmem:[#allocation3 + $0x29] sm:$0x7f]
    %v1586 = vld [vmem:[#allocation3 + $0x31] sm:$0xff]
    %v1587 = vld [vmem:[#allocation3 + $0x39] sm:$0x7f]
    %v1588 = vld [vmem:[#allocation3 + $0x41] sm:$0xff]
    %v1589 = vld [vmem:[#allocation3 + $0x49] sm:$0x7f]
    %v1590 = vld [vmem:[#allocation3 + $0x51] sm:$0xff]
    %v1591 = vld [vmem:[#allocation3 + $0x59] sm:$0x7f]
    %v1592 = vld [vmem:[#allocation3 + $0x61] sm:$0xff]
    %v1593 = vld [vmem:[#allocation3 + $0x69] sm:$0x7f]
    %v1594 = vld [vmem:[#allocation3 + $0x71] sm:$0xff]
    %v1595 = vld [vmem:[#allocation3 + $0x79] sm:$0x7f]
    %v1596 = vsel %vm259, %v1580, 0.0
    %1597 = vadd.xlane.f32.xlu0 %v1596
    %v1598 = vpop.xlane.xlu0 %1597
    %v1599 = vsel %vm263, %v1581, 0.0
    %1600 = vadd.xlane.f32.xlu0 %v1599
    %v1601 = vpop.xlane.xlu0 %1600
    %v1602 = vsel %vm259, %v1582, 0.0
    %1603 = vadd.xlane.f32.xlu0 %v1602
    %v1604 = vpop.xlane.xlu0 %1603
    %v1605 = vsel %vm263, %v1583, 0.0
    %1606 = vadd.xlane.f32.xlu0 %v1605
    %v1607 = vpop.xlane.xlu0 %1606
    %v1608 = vsel %vm259, %v1584, 0.0
    %1609 = vadd.xlane.f32.xlu0 %v1608
    %v1610 = vpop.xlane.xlu0 %1609
    %v1611 = vsel %vm263, %v1585, 0.0
    %1612 = vadd.xlane.f32.xlu0 %v1611
    %v1613 = vpop.xlane.xlu0 %1612
    %v1614 = vsel %vm259, %v1586, 0.0
    %1615 = vadd.xlane.f32.xlu0 %v1614
    %v1616 = vpop.xlane.xlu0 %1615
    %v1617 = vsel %vm263, %v1587, 0.0
    %1618 = vadd.xlane.f32.xlu0 %v1617
    %v1619 = vpop.xlane.xlu0 %1618
    %v1620 = vsel %vm259, %v1588, 0.0
    %1621 = vadd.xlane.f32.xlu0 %v1620
    %v1622 = vpop.xlane.xlu0 %1621
    %v1623 = vsel %vm263, %v1589, 0.0
    %1624 = vadd.xlane.f32.xlu0 %v1623
    %v1625 = vpop.xlane.xlu0 %1624
    %v1626 = vsel %vm259, %v1590, 0.0
    %1627 = vadd.xlane.f32.xlu0 %v1626
    %v1628 = vpop.xlane.xlu0 %1627
    %v1629 = vsel %vm263, %v1591, 0.0
    %1630 = vadd.xlane.f32.xlu0 %v1629
    %v1631 = vpop.xlane.xlu0 %1630
    %v1632 = vsel %vm259, %v1592, 0.0
    %1633 = vadd.xlane.f32.xlu0 %v1632
    %v1634 = vpop.xlane.xlu0 %1633
    %v1635 = vsel %vm263, %v1593, 0.0
    %1636 = vadd.xlane.f32.xlu0 %v1635
    %v1637 = vpop.xlane.xlu0 %1636
    %v1638 = vsel %vm259, %v1594, 0.0
    %1639 = vadd.xlane.f32.xlu0 %v1638
    %v1640 = vpop.xlane.xlu0 %1639
    %v1641 = vsel %vm263, %v1595, 0.0
    %1642 = vadd.xlane.f32.xlu0 %v1641
    %v1643 = vpop.xlane.xlu0 %1642
    %v1660 = vlaneseq
    %v1661 = vshrl.u32 %v1660, 7
    %v1662 = vsub.s32 %v114, %v1661
    %v1663 = vrot.slane %v1598, %v1662
    %v1664 = vlaneseq
    %v1665 = vshrl.u32 %v1664, 7
    %v1666 = vsub.s32 %v119, %v1665
    %v1667 = vrot.slane %v1601, %v1666
    %v1668 = vsel %vm124, %v1667, %v1663
    %v1669 = vlaneseq
    %v1670 = vshrl.u32 %v1669, 7
    %v1671 = vsub.s32 %v114, %v1670
    %v1672 = vrot.slane %v1604, %v1671
    %v1673 = vlaneseq
    %v1674 = vshrl.u32 %v1673, 7
    %v1675 = vsub.s32 %v119, %v1674
    %v1676 = vrot.slane %v1607, %v1675
    %v1677 = vsel %vm124, %v1676, %v1672
    %v1678 = vlaneseq
    %v1679 = vshrl.u32 %v1678, 7
    %v1680 = vsub.s32 %v114, %v1679
    %v1681 = vrot.slane %v1610, %v1680
    %v1682 = vlaneseq
    %v1683 = vshrl.u32 %v1682, 7
    %v1684 = vsub.s32 %v119, %v1683
    %v1685 = vrot.slane %v1613, %v1684
    %v1686 = vsel %vm124, %v1685, %v1681
    %v1687 = vlaneseq
    %v1688 = vshrl.u32 %v1687, 7
    %v1689 = vsub.s32 %v114, %v1688
    %v1690 = vrot.slane %v1616, %v1689
    %v1691 = vlaneseq
    %v1692 = vshrl.u32 %v1691, 7
    %v1693 = vsub.s32 %v119, %v1692
    %v1694 = vrot.slane %v1619, %v1693
    %v1695 = vsel %vm124, %v1694, %v1690
    %v1696 = vlaneseq
    %v1697 = vshrl.u32 %v1696, 7
    %v1698 = vsub.s32 %v114, %v1697
    %v1699 = vrot.slane %v1622, %v1698
    %v1700 = vlaneseq
    %v1701 = vshrl.u32 %v1700, 7
    %v1702 = vsub.s32 %v119, %v1701
    %v1703 = vrot.slane %v1625, %v1702
    %v1704 = vsel %vm124, %v1703, %v1699
    %v1705 = vlaneseq
    %v1706 = vshrl.u32 %v1705, 7
    %v1707 = vsub.s32 %v114, %v1706
    %v1708 = vrot.slane %v1628, %v1707
    %v1709 = vlaneseq
    %v1710 = vshrl.u32 %v1709, 7
    %v1711 = vsub.s32 %v119, %v1710
    %v1712 = vrot.slane %v1631, %v1711
    %v1713 = vsel %vm124, %v1712, %v1708
    %v1714 = vlaneseq
    %v1715 = vshrl.u32 %v1714, 7
    %v1716 = vsub.s32 %v114, %v1715
    %v1717 = vrot.slane %v1634, %v1716
    %v1718 = vlaneseq
    %v1719 = vshrl.u32 %v1718, 7
    %v1720 = vsub.s32 %v119, %v1719
    %v1721 = vrot.slane %v1637, %v1720
    %v1722 = vsel %vm124, %v1721, %v1717
    %v1723 = vlaneseq
    %v1724 = vshrl.u32 %v1723, 7
    %v1725 = vsub.s32 %v114, %v1724
    %v1726 = vrot.slane %v1640, %v1725
    %v1727 = vlaneseq
    %v1728 = vshrl.u32 %v1727, 7
    %v1729 = vsub.s32 %v119, %v1728
    %v1730 = vrot.slane %v1643, %v1729
    %v1731 = vsel %vm124, %v1730, %v1726
    %v1732 = vsel %vm189, %v1677, %v1668
    %v1733 = vsel %vm189, %v1695, %v1686
    %v1734 = vsel %vm189, %v1713, %v1704
    %v1735 = vsel %vm189, %v1731, %v1722
    %v1740 = vsel %vm198, %v1732, 0.0
    %1741 = vadd.xlane.f32.xlu0 %v1740
    %v1742 = vpop.xlane.xlu0 %1741
    %v1743 = vsel %vm198, %v1733, 0.0
    %1744 = vadd.xlane.f32.xlu0 %v1743
    %v1745 = vpop.xlane.xlu0 %1744
    %v1746 = vsel %vm198, %v1734, 0.0
    %1747 = vadd.xlane.f32.xlu0 %v1746
    %v1748 = vpop.xlane.xlu0 %1747
    %v1749 = vsel %vm198, %v1735, 0.0
    %1750 = vadd.xlane.f32.xlu0 %v1749
    %v1751 = vpop.xlane.xlu0 %1750
    %v1752 = vmul.f32 %v1742, 0.00390625
    %v1753 = vmul.f32 %v1745, 0.00390625
    %v1754 = vmul.f32 %v1748, 0.00390625
    %v1755 = vmul.f32 %v1751, 0.00390625
    %v1760 = vlaneseq
    %v1761 = vshrl.u32 %v1760, 7
    %v1762 = vsub.s32 %v114, %v1761
    %v1763 = vrot.slane %v1752, %v1762
    %v1764 = vlaneseq
    %v1765 = vshrl.u32 %v1764, 7
    %v1766 = vsub.s32 %v114, %v1765
    %v1767 = vrot.slane %v1753, %v1766
    %v1768 = vlaneseq
    %v1769 = vshrl.u32 %v1768, 7
    %v1770 = vsub.s32 %v114, %v1769
    %v1771 = vrot.slane %v1754, %v1770
    %v1772 = vlaneseq
    %v1773 = vshrl.u32 %v1772, 7
    %v1774 = vsub.s32 %v114, %v1773
    %v1775 = vrot.slane %v1755, %v1774
    %v1776 = vsel %vm189, %v1767, %v1763
    %v1777 = vsel %vm236, %v1771, %v1776
    %v1778 = vsel %vm238, %v1775, %v1777
    %1780 = vst.msk [vmem:[#allocation2 + $0x1c] sm:$0xf] %vm241, %v1778
    %v1781 = vld [vmem:[#allocation3 + $0x1] sm:$0xff]
    %v1782 = vld [vmem:[#allocation3 + $0x9] sm:$0x7f]
    %v1783 = vld [vmem:[#allocation3 + $0x11] sm:$0xff]
    %v1784 = vld [vmem:[#allocation3 + $0x19] sm:$0x7f]
    %v1785 = vld [vmem:[#allocation3 + $0x21] sm:$0xff]
    %v1786 = vld [vmem:[#allocation3 + $0x29] sm:$0x7f]
    %v1787 = vld [vmem:[#allocation3 + $0x31] sm:$0xff]
    %v1788 = vld [vmem:[#allocation3 + $0x39] sm:$0x7f]
    %v1789 = vld [vmem:[#allocation3 + $0x41] sm:$0xff]
    %v1790 = vld [vmem:[#allocation3 + $0x49] sm:$0x7f]
    %v1791 = vld [vmem:[#allocation3 + $0x51] sm:$0xff]
    %v1792 = vld [vmem:[#allocation3 + $0x59] sm:$0x7f]
    %v1793 = vld [vmem:[#allocation3 + $0x61] sm:$0xff]
    %v1794 = vld [vmem:[#allocation3 + $0x69] sm:$0x7f]
    %v1795 = vld [vmem:[#allocation3 + $0x71] sm:$0xff]
    %v1796 = vld [vmem:[#allocation3 + $0x79] sm:$0x7f]
    %1813 = vrot.lane.b32.xlu0 %v1781, 127
    %v1814 = vpop.permute.xlu0 %1813
    %1815 = vrot.lane.b32.xlu0 %v1782, 127
    %v1816 = vpop.permute.xlu0 %1815
    %1817 = vrot.lane.b32.xlu0 %v1783, 127
    %v1818 = vpop.permute.xlu0 %1817
    %1819 = vrot.lane.b32.xlu0 %v1784, 127
    %v1820 = vpop.permute.xlu0 %1819
    %1821 = vrot.lane.b32.xlu0 %v1785, 127
    %v1822 = vpop.permute.xlu0 %1821
    %1823 = vrot.lane.b32.xlu0 %v1786, 127
    %v1824 = vpop.permute.xlu0 %1823
    %1825 = vrot.lane.b32.xlu0 %v1787, 127
    %v1826 = vpop.permute.xlu0 %1825
    %1827 = vrot.lane.b32.xlu0 %v1788, 127
    %v1828 = vpop.permute.xlu0 %1827
    %1829 = vrot.lane.b32.xlu0 %v1789, 127
    %v1830 = vpop.permute.xlu0 %1829
    %1831 = vrot.lane.b32.xlu0 %v1790, 127
    %v1832 = vpop.permute.xlu0 %1831
    %1833 = vrot.lane.b32.xlu0 %v1791, 127
    %v1834 = vpop.permute.xlu0 %1833
    %1835 = vrot.lane.b32.xlu0 %v1792, 127
    %v1836 = vpop.permute.xlu0 %1835
    %1837 = vrot.lane.b32.xlu0 %v1793, 127
    %v1838 = vpop.permute.xlu0 %1837
    %1839 = vrot.lane.b32.xlu0 %v1794, 127
    %v1840 = vpop.permute.xlu0 %1839
    %1841 = vrot.lane.b32.xlu0 %v1795, 127
    %v1842 = vpop.permute.xlu0 %1841
    %1843 = vrot.lane.b32.xlu0 %v1796, 127
    %v1844 = vpop.permute.xlu0 %1843
    %v1861 = vsel %vm47, %v1814, 0.0
    %1862 = vadd.xlane.f32.xlu0 %v1861
    %v1863 = vpop.xlane.xlu0 %1862
    %v1864 = vsel %vm51, %v1816, 0.0
    %1865 = vadd.xlane.f32.xlu0 %v1864
    %v1866 = vpop.xlane.xlu0 %1865
    %v1867 = vsel %vm47, %v1818, 0.0
    %1868 = vadd.xlane.f32.xlu0 %v1867
    %v1869 = vpop.xlane.xlu0 %1868
    %v1870 = vsel %vm51, %v1820, 0.0
    %1871 = vadd.xlane.f32.xlu0 %v1870
    %v1872 = vpop.xlane.xlu0 %1871
    %v1873 = vsel %vm47, %v1822, 0.0
    %1874 = vadd.xlane.f32.xlu0 %v1873
    %v1875 = vpop.xlane.xlu0 %1874
    %v1876 = vsel %vm51, %v1824, 0.0
    %1877 = vadd.xlane.f32.xlu0 %v1876
    %v1878 = vpop.xlane.xlu0 %1877
    %v1879 = vsel %vm47, %v1826, 0.0
    %1880 = vadd.xlane.f32.xlu0 %v1879
    %v1881 = vpop.xlane.xlu0 %1880
    %v1882 = vsel %vm51, %v1828, 0.0
    %1883 = vadd.xlane.f32.xlu0 %v1882
    %v1884 = vpop.xlane.xlu0 %1883
    %v1885 = vsel %vm47, %v1830, 0.0
    %1886 = vadd.xlane.f32.xlu0 %v1885
    %v1887 = vpop.xlane.xlu0 %1886
    %v1888 = vsel %vm51, %v1832, 0.0
    %1889 = vadd.xlane.f32.xlu0 %v1888
    %v1890 = vpop.xlane.xlu0 %1889
    %v1891 = vsel %vm47, %v1834, 0.0
    %1892 = vadd.xlane.f32.xlu0 %v1891
    %v1893 = vpop.xlane.xlu0 %1892
    %v1894 = vsel %vm51, %v1836, 0.0
    %1895 = vadd.xlane.f32.xlu0 %v1894
    %v1896 = vpop.xlane.xlu0 %1895
    %v1897 = vsel %vm47, %v1838, 0.0
    %1898 = vadd.xlane.f32.xlu0 %v1897
    %v1899 = vpop.xlane.xlu0 %1898
    %v1900 = vsel %vm51, %v1840, 0.0
    %1901 = vadd.xlane.f32.xlu0 %v1900
    %v1902 = vpop.xlane.xlu0 %1901
    %v1903 = vsel %vm47, %v1842, 0.0
    %1904 = vadd.xlane.f32.xlu0 %v1903
    %v1905 = vpop.xlane.xlu0 %1904
    %v1906 = vsel %vm51, %v1844, 0.0
    %1907 = vadd.xlane.f32.xlu0 %v1906
    %v1908 = vpop.xlane.xlu0 %1907
    %v1925 = vlaneseq
    %v1926 = vshrl.u32 %v1925, 7
    %v1927 = vsub.s32 %v114, %v1926
    %v1928 = vrot.slane %v1863, %v1927
    %v1929 = vlaneseq
    %v1930 = vshrl.u32 %v1929, 7
    %v1931 = vsub.s32 %v119, %v1930
    %v1932 = vrot.slane %v1866, %v1931
    %v1933 = vsel %vm124, %v1932, %v1928
    %v1934 = vlaneseq
    %v1935 = vshrl.u32 %v1934, 7
    %v1936 = vsub.s32 %v114, %v1935
    %v1937 = vrot.slane %v1869, %v1936
    %v1938 = vlaneseq
    %v1939 = vshrl.u32 %v1938, 7
    %v1940 = vsub.s32 %v119, %v1939
    %v1941 = vrot.slane %v1872, %v1940
    %v1942 = vsel %vm124, %v1941, %v1937
    %v1943 = vlaneseq
    %v1944 = vshrl.u32 %v1943, 7
    %v1945 = vsub.s32 %v114, %v1944
    %v1946 = vrot.slane %v1875, %v1945
    %v1947 = vlaneseq
    %v1948 = vshrl.u32 %v1947, 7
    %v1949 = vsub.s32 %v119, %v1948
    %v1950 = vrot.slane %v1878, %v1949
    %v1951 = vsel %vm124, %v1950, %v1946
    %v1952 = vlaneseq
    %v1953 = vshrl.u32 %v1952, 7
    %v1954 = vsub.s32 %v114, %v1953
    %v1955 = vrot.slane %v1881, %v1954
    %v1956 = vlaneseq
    %v1957 = vshrl.u32 %v1956, 7
    %v1958 = vsub.s32 %v119, %v1957
    %v1959 = vrot.slane %v1884, %v1958
    %v1960 = vsel %vm124, %v1959, %v1955
    %v1961 = vlaneseq
    %v1962 = vshrl.u32 %v1961, 7
    %v1963 = vsub.s32 %v114, %v1962
    %v1964 = vrot.slane %v1887, %v1963
    %v1965 = vlaneseq
    %v1966 = vshrl.u32 %v1965, 7
    %v1967 = vsub.s32 %v119, %v1966
    %v1968 = vrot.slane %v1890, %v1967
    %v1969 = vsel %vm124, %v1968, %v1964
    %v1970 = vlaneseq
    %v1971 = vshrl.u32 %v1970, 7
    %v1972 = vsub.s32 %v114, %v1971
    %v1973 = vrot.slane %v1893, %v1972
    %v1974 = vlaneseq
    %v1975 = vshrl.u32 %v1974, 7
    %v1976 = vsub.s32 %v119, %v1975
    %v1977 = vrot.slane %v1896, %v1976
    %v1978 = vsel %vm124, %v1977, %v1973
    %v1979 = vlaneseq
    %v1980 = vshrl.u32 %v1979, 7
    %v1981 = vsub.s32 %v114, %v1980
    %v1982 = vrot.slane %v1899, %v1981
    %v1983 = vlaneseq
    %v1984 = vshrl.u32 %v1983, 7
    %v1985 = vsub.s32 %v119, %v1984
    %v1986 = vrot.slane %v1902, %v1985
    %v1987 = vsel %vm124, %v1986, %v1982
    %v1988 = vlaneseq
    %v1989 = vshrl.u32 %v1988, 7
    %v1990 = vsub.s32 %v114, %v1989
    %v1991 = vrot.slane %v1905, %v1990
    %v1992 = vlaneseq
    %v1993 = vshrl.u32 %v1992, 7
    %v1994 = vsub.s32 %v119, %v1993
    %v1995 = vrot.slane %v1908, %v1994
    %v1996 = vsel %vm124, %v1995, %v1991
    %v1997 = vsel %vm189, %v1942, %v1933
    %v1998 = vsel %vm189, %v1960, %v1951
    %v1999 = vsel %vm189, %v1978, %v1969
    %v2000 = vsel %vm189, %v1996, %v1987
    %v2005 = vsel %vm198, %v1997, 0.0
    %2006 = vadd.xlane.f32.xlu0 %v2005
    %v2007 = vpop.xlane.xlu0 %2006
    %v2008 = vsel %vm198, %v1998, 0.0
    %2009 = vadd.xlane.f32.xlu0 %v2008
    %v2010 = vpop.xlane.xlu0 %2009
    %v2011 = vsel %vm198, %v1999, 0.0
    %2012 = vadd.xlane.f32.xlu0 %v2011
    %v2013 = vpop.xlane.xlu0 %2012
    %v2014 = vsel %vm198, %v2000, 0.0
    %2015 = vadd.xlane.f32.xlu0 %v2014
    %v2016 = vpop.xlane.xlu0 %2015
    %v2017 = vmul.f32 %v2007, 0.00390625
    %v2018 = vmul.f32 %v2010, 0.00390625
    %v2019 = vmul.f32 %v2013, 0.00390625
    %v2020 = vmul.f32 %v2016, 0.00390625
    %v2025 = vlaneseq
    %v2026 = vshrl.u32 %v2025, 7
    %v2027 = vsub.s32 %v114, %v2026
    %v2028 = vrot.slane %v2017, %v2027
    %v2029 = vlaneseq
    %v2030 = vshrl.u32 %v2029, 7
    %v2031 = vsub.s32 %v114, %v2030
    %v2032 = vrot.slane %v2018, %v2031
    %v2033 = vlaneseq
    %v2034 = vshrl.u32 %v2033, 7
    %v2035 = vsub.s32 %v114, %v2034
    %v2036 = vrot.slane %v2019, %v2035
    %v2037 = vlaneseq
    %v2038 = vshrl.u32 %v2037, 7
    %v2039 = vsub.s32 %v114, %v2038
    %v2040 = vrot.slane %v2020, %v2039
    %v2041 = vsel %vm189, %v2032, %v2028
    %v2042 = vsel %vm236, %v2036, %v2041
    %v2043 = vsel %vm238, %v2040, %v2042
    %2045 = vst.msk [vmem:[#allocation2 + $0x20] sm:$0xf] %vm241, %v2043
    %v2046 = vld [vmem:[%s1] sm:$0xff]
    %v2047 = vld [vmem:[#allocation2] sm:$0xff]
    %v2048 = vld [vmem:[#allocation2 + $0x8] sm:$0xff]
    %v2049 = vld [vmem:[#allocation2 + $0x10] sm:$0xff]
    %v2050 = vld [vmem:[#allocation2 + $0x18] sm:$0xff]
    %v2051 = vld [vmem:[#allocation2 + $0x20] sm:$0xf]
    %vm2052 = vcmask 293888
    %v2054 = vsel %vm2052, %v2046, 0
    %vm2056 = vcmask 1043456
    %v2058 = vsel %vm2056, %v2051, 0
    %2060 = vmatprep.subr.mxu0 0.0
    %2061 = vmatpush1.msra.mxu0 0.0
    %2062 = vmatprep.subr.mxu0 0.0
    %2063 = vmatpush1.msra.mxu0 0.0
    %2064 = vmatprep.subr.mxu0 0.0
    %2065 = vmatpush1.msra.mxu0 0.0
    %2066 = vmatprep.subr.mxu0 0.0
    %2067 = vmatpush1.msra.mxu0 0.0
    %2068 = vmatprep.subr.mxu0 0.0
    %2069 = vmatpush1.msra.mxu0 0.0
    %2070 = vmatprep.subr.mxu0 0.0
    %2071 = vmatpush1.msra.mxu0 0.0
    %2072 = vmatprep.subr.mxu0 0.0
    %2073 = vmatpush1.msra.mxu0 0.0
    %2074 = vmatprep.subr.mxu0 0.0
    %2075 = vmatpush1.msra.mxu0 0.0
    %2076 = vmatprep.subr.mxu0 0.0
    %2077 = vmatpush1.msra.mxu0 0.0
    %2078 = vmatprep.subr.mxu0 0.0
    %2079 = vmatpush1.msra.mxu0 0.0
    %2080 = vmatprep.subr.mxu0 0.0
    %2081 = vmatpush1.msra.mxu0 0.0
    %2082 = vmatprep.subr.mxu0 0.0
    %2083 = vmatpush1.msra.mxu0 %v2058
    %2084 = vmatprep.subr.mxu0 0.0
    %2085 = vmatpush1.msra.mxu0 %v2050
    %2086 = vmatprep.subr.mxu0 0.0
    %2087 = vmatpush1.msra.mxu0 %v2049
    %2088 = vmatprep.subr.mxu0 0.0
    %2089 = vmatpush1.msra.mxu0 %v2048
    %2090 = vmatprep.subr.mxu0 0.0
    %2091 = vmatpush1.msra.mxu0 %v2047
    %2092 = vmatprep.subr.mxu0 0.0
    %2093 = vmatpush2.msra.mxu0 0.0
    %2094 = vmatprep.subr.mxu0 0.0
    %2095 = vmatpush2.msra.mxu0 0.0
    %2096 = vmatprep.subr.mxu0 0.0
    %2097 = vmatpush2.msra.mxu0 0.0
    %2098 = vmatprep.subr.mxu0 0.0
    %2099 = vmatpush2.msra.mxu0 0.0
    %2100 = vmatprep.subr.mxu0 0.0
    %2101 = vmatpush2.msra.mxu0 0.0
    %2102 = vmatprep.subr.mxu0 0.0
    %2103 = vmatpush2.msra.mxu0 0.0
    %2104 = vmatprep.subr.mxu0 0.0
    %2105 = vmatpush2.msra.mxu0 0.0
    %2106 = vmatprep.subr.mxu0 0.0
    %2107 = vmatpush2.msra.mxu0 0.0
    %2108 = vmatprep.subr.mxu0 0.0
    %2109 = vmatpush2.msra.mxu0 0.0
    %2110 = vmatprep.subr.mxu0 0.0
    %2111 = vmatpush2.msra.mxu0 0.0
    %2112 = vmatprep.subr.mxu0 0.0
    %2113 = vmatpush2.msra.mxu0 0.0
    %2114 = vmatprep.subr.mxu0 0.0
    %2115 = vmatpush2.msra.mxu0 0.0
    %2116 = vmatprep.subr.mxu0 0.0
    %2117 = vmatpush2.msra.mxu0 0.0
    %2118 = vmatprep.subr.mxu0 0.0
    %2119 = vmatpush2.msra.mxu0 0.0
    %2120 = vmatprep.subr.mxu0 0.0
    %2121 = vmatpush2.msra.mxu0 0.0
    %2122 = vmatprep.subr.mxu0 0.0
    %2123 = vmatpush2.msra.mxu0 0.0
    %2124 = vmatprep.mubr.f32.mxu0 0.0
    %2125 = vmatmul.mubr.f32.gmra.mxu0 %v2054
    %v2126 = vpop.f32.mrf.mxu0
    %v2127 = vadd.f32 0.0, %v2126
    %v2128 = vpop.f32.mrf.mxu0
    %2129 = vdwg.mxu0
    %v2130 = vld [vmem:[%s2] sm:$0x3]
    %vm2131 = vcmask 64512
    %v2133 = vsel %vm2131, %v2130, 0
    %2135 = vmatprep.subr.mxu0 0.0
    %2136 = vmatpush1.msra.mxu0 0.0
    %2137 = vmatprep.subr.mxu0 0.0
    %2138 = vmatpush1.msra.mxu0 0.0
    %2139 = vmatprep.subr.mxu0 0.0
    %2140 = vmatpush1.msra.mxu0 0.0
    %2141 = vmatprep.subr.mxu0 0.0
    %2142 = vmatpush1.msra.mxu0 0.0
    %2143 = vmatprep.subr.mxu0 0.0
    %2144 = vmatpush1.msra.mxu0 0.0
    %2145 = vmatprep.subr.mxu0 0.0
    %2146 = vmatpush1.msra.mxu0 0.0
    %2147 = vmatprep.subr.mxu0 0.0
    %2148 = vmatpush1.msra.mxu0 0.0
    %2149 = vmatprep.subr.mxu0 0.0
    %2150 = vmatpush1.msra.mxu0 0.0
    %2151 = vmatprep.subr.mxu0 0.0
    %2152 = vmatpush1.msra.mxu0 0.0
    %2153 = vmatprep.subr.mxu0 0.0
    %2154 = vmatpush1.msra.mxu0 0.0
    %2155 = vmatprep.subr.mxu0 0.0
    %2156 = vmatpush1.msra.mxu0 0.0
    %2157 = vmatprep.subr.mxu0 0.0
    %2158 = vmatpush1.msra.mxu0 0.0
    %2159 = vmatprep.subr.mxu0 0.0
    %2160 = vmatpush1.msra.mxu0 0.0
    %2161 = vmatprep.subr.mxu0 0.0
    %2162 = vmatpush1.msra.mxu0 0.0
    %2163 = vmatprep.subr.mxu0 0.0
    %2164 = vmatpush1.msra.mxu0 0.0
    %2165 = vmatprep.subr.mxu0 0.0
    %2166 = vmatpush1.msra.mxu0 %v2127
    %2167 = vmatprep.subr.mxu0 0.0
    %2168 = vmatpush2.msra.mxu0 0.0
    %2169 = vmatprep.subr.mxu0 0.0
    %2170 = vmatpush2.msra.mxu0 0.0
    %2171 = vmatprep.subr.mxu0 0.0
    %2172 = vmatpush2.msra.mxu0 0.0
    %2173 = vmatprep.subr.mxu0 0.0
    %2174 = vmatpush2.msra.mxu0 0.0
    %2175 = vmatprep.subr.mxu0 0.0
    %2176 = vmatpush2.msra.mxu0 0.0
    %2177 = vmatprep.subr.mxu0 0.0
    %2178 = vmatpush2.msra.mxu0 0.0
    %2179 = vmatprep.subr.mxu0 0.0
    %2180 = vmatpush2.msra.mxu0 0.0
    %2181 = vmatprep.subr.mxu0 0.0
    %2182 = vmatpush2.msra.mxu0 0.0
    %2183 = vmatprep.subr.mxu0 0.0
    %2184 = vmatpush2.msra.mxu0 0.0
    %2185 = vmatprep.subr.mxu0 0.0
    %2186 = vmatpush2.msra.mxu0 0.0
    %2187 = vmatprep.subr.mxu0 0.0
    %2188 = vmatpush2.msra.mxu0 0.0
    %2189 = vmatprep.subr.mxu0 0.0
    %2190 = vmatpush2.msra.mxu0 0.0
    %2191 = vmatprep.subr.mxu0 0.0
    %2192 = vmatpush2.msra.mxu0 0.0
    %2193 = vmatprep.subr.mxu0 0.0
    %2194 = vmatpush2.msra.mxu0 0.0
    %2195 = vmatprep.subr.mxu0 0.0
    %2196 = vmatpush2.msra.mxu0 0.0
    %2197 = vmatprep.subr.mxu0 0.0
    %2198 = vmatpush2.msra.mxu0 0.0
    %2199 = vmatprep.mubr.f32.mxu0 0.0
    %2200 = vmatmul.mubr.f32.gmra.mxu0 %v2133
    %v2201 = vpop.f32.mrf.mxu0
    %v2202 = vadd.f32 0.0, %v2201
    %v2203 = vpop.f32.mrf.mxu0
    %2204 = vdwg.mxu0
    %vm2205 = vcmp.gt.f32.partialorder %v2202, 0.0
    %v2206 = vmul.f32 %v2202, 0.01
    %v2207 = vsel %vm2205, %v2202, %v2206
    %v2208 = vld [vmem:[%s3] sm:$0xff]
    %vm2209 = vcmask 15360
    %v2211 = vsel %vm2209, %v2208, 0
    %vm2213 = vcmask 1041408
    %v2215 = vsel %vm2213, %v2207, 0
    %2217 = vmatprep.subr.mxu0 0.0
    %2218 = vmatpush1.msra.mxu0 0.0
    %2219 = vmatprep.subr.mxu0 0.0
    %2220 = vmatpush1.msra.mxu0 0.0
    %2221 = vmatprep.subr.mxu0 0.0
    %2222 = vmatpush1.msra.mxu0 0.0
    %2223 = vmatprep.subr.mxu0 0.0
    %2224 = vmatpush1.msra.mxu0 0.0
    %2225 = vmatprep.subr.mxu0 0.0
    %2226 = vmatpush1.msra.mxu0 0.0
    %2227 = vmatprep.subr.mxu0 0.0
    %2228 = vmatpush1.msra.mxu0 0.0
    %2229 = vmatprep.subr.mxu0 0.0
    %2230 = vmatpush1.msra.mxu0 0.0
    %2231 = vmatprep.subr.mxu0 0.0
    %2232 = vmatpush1.msra.mxu0 0.0
    %2233 = vmatprep.subr.mxu0 0.0
    %2234 = vmatpush1.msra.mxu0 0.0
    %2235 = vmatprep.subr.mxu0 0.0
    %2236 = vmatpush1.msra.mxu0 0.0
    %2237 = vmatprep.subr.mxu0 0.0
    %2238 = vmatpush1.msra.mxu0 0.0
    %2239 = vmatprep.subr.mxu0 0.0
    %2240 = vmatpush1.msra.mxu0 0.0
    %2241 = vmatprep.subr.mxu0 0.0
    %2242 = vmatpush1.msra.mxu0 0.0
    %2243 = vmatprep.subr.mxu0 0.0
    %2244 = vmatpush1.msra.mxu0 0.0
    %2245 = vmatprep.subr.mxu0 0.0
    %2246 = vmatpush1.msra.mxu0 0.0
    %2247 = vmatprep.subr.mxu0 0.0
    %2248 = vmatpush1.msra.mxu0 %v2215
    %2249 = vmatprep.subr.mxu0 0.0
    %2250 = vmatpush2.msra.mxu0 0.0
    %2251 = vmatprep.subr.mxu0 0.0
    %2252 = vmatpush2.msra.mxu0 0.0
    %2253 = vmatprep.subr.mxu0 0.0
    %2254 = vmatpush2.msra.mxu0 0.0
    %2255 = vmatprep.subr.mxu0 0.0
    %2256 = vmatpush2.msra.mxu0 0.0
    %2257 = vmatprep.subr.mxu0 0.0
    %2258 = vmatpush2.msra.mxu0 0.0
    %2259 = vmatprep.subr.mxu0 0.0
    %2260 = vmatpush2.msra.mxu0 0.0
    %2261 = vmatprep.subr.mxu0 0.0
    %2262 = vmatpush2.msra.mxu0 0.0
    %2263 = vmatprep.subr.mxu0 0.0
    %2264 = vmatpush2.msra.mxu0 0.0
    %2265 = vmatprep.subr.mxu0 0.0
    %2266 = vmatpush2.msra.mxu0 0.0
    %2267 = vmatprep.subr.mxu0 0.0
    %2268 = vmatpush2.msra.mxu0 0.0
    %2269 = vmatprep.subr.mxu0 0.0
    %2270 = vmatpush2.msra.mxu0 0.0
    %2271 = vmatprep.subr.mxu0 0.0
    %2272 = vmatpush2.msra.mxu0 0.0
    %2273 = vmatprep.subr.mxu0 0.0
    %2274 = vmatpush2.msra.mxu0 0.0
    %2275 = vmatprep.subr.mxu0 0.0
    %2276 = vmatpush2.msra.mxu0 0.0
    %2277 = vmatprep.subr.mxu0 0.0
    %2278 = vmatpush2.msra.mxu0 0.0
    %2279 = vmatprep.subr.mxu0 0.0
    %2280 = vmatpush2.msra.mxu0 0.0
    %2281 = vmatprep.mubr.f32.mxu0 0.0
    %2282 = vmatmul.mubr.f32.gmra.mxu0 %v2211
    %v2283 = vpop.f32.mrf.mxu0
    %v2284 = vadd.f32 0.0, %v2283
    %v2285 = vpop.f32.mrf.mxu0
    %2286 = vdwg.mxu0
    %2287 = vst.msk [vmem:[%s4] sm:$0xff] %vm2209, %v2284
    // Predicated region
    $region22: #{tpu_custom_call.1} parent=1 // pred_check
      _
    $region23: #{tpu_custom_call.1} parent=1 // pred_check_branch
      %2289 = sbr.rel (0) target = $region25
    $region24: #{tpu_custom_call.1} parent=1 // pred_region
      _
    $region25: #{tpu_custom_call.1} parent=1 // pred_fallthru
      _
    // Predicated region
    $region26: #{tpu_custom_call.1} parent=1 // pred_check
      _
    $region27: #{tpu_custom_call.1} parent=1 // pred_check_branch
      %2291 = sbr.rel (0) target = $region29
    $region28: #{tpu_custom_call.1} parent=1 // pred_region
      _
    $region29: #{tpu_custom_call.1} parent=1 // pred_fallthru
      _
    %2292 = vsyncpa [#allocation4], 1

</llo_original>
